<compile_context>
chip_gen: v6e
topology: v6e:2x2x1
jax: 0.10.0
libtpu: 0.0.40
codegen_flags: <defaults>
</compile_context>

<pallas_src>
import math

import jax
import jax.numpy as jnp
from jax.experimental import pallas as pl
from jax.experimental.pallas import tpu as pltpu


def gfft_kernel(x_ref, bt_ref, out_ref):
    # x_ref:   (C, TN)    pixel tile, pixels on the lane axis (lane dense)
    # bt_ref:  (M, C)     transposed Gaussian projection matrix, resident every step
    # out_ref: (2*M, TN)  rows [0:M] = sin, rows [M:2M] = cos
    m = bt_ref.shape[0]
    proj = jnp.dot(bt_ref[...], x_ref[...], preferred_element_type=jnp.float32)
    proj = (2.0 * math.pi) * proj
    out_ref[0:m, :] = jnp.sin(proj)
    out_ref[m:, :] = jnp.cos(proj)


def gaussian_fourier_feature_transform(x, b_mat, *, tn=1024):
    """x: [B, C, W, H] float; b_mat: [C, M].  Returns [B, 2*M, W, H] float32."""
    b, c, w, h = x.shape
    assert c == b_mat.shape[0], "channel mismatch"
    m = b_mat.shape[1]
    wh = w * h

    # NCHW -> [B, C, W*H]: pure reshape, no transpose / extra HBM pass.
    x_flat = x.reshape(b, c, wh).astype(jnp.float32)

    # Pixel tile: multiple of 128 lanes, no larger than the (padded) pixel count.
    tn = max(128, min(tn, pl.cdiv(wh, 128) * 128))
    wh_pad = pl.cdiv(wh, tn) * tn
    if wh_pad != wh:
        x_flat = jnp.pad(x_flat, ((0, 0), (0, 0), (0, wh_pad - wh)))

    bt = jnp.transpose(b_mat).astype(jnp.float32)  # (M, C) — tiny, resident in VMEM

    out_flat = pl.pallas_call(
        gfft_kernel,
        out_shape=jax.ShapeDtypeStruct((b, 2 * m, wh_pad), jnp.float32),
        grid_spec=pltpu.PrefetchScalarGridSpec(
            num_scalar_prefetch=0,
            grid=(b, wh_pad // tn),
            in_specs=[
                # (batch squeezed, full C, TN pixels)
                pl.BlockSpec((None, c, tn), lambda bi, pi: (bi, 0, pi)),
                # full projection matrix, reused every grid step
                pl.BlockSpec((m, c), lambda bi, pi: (0, 0)),
            ],
            out_specs=pl.BlockSpec((None, 2 * m, tn), lambda bi, pi: (bi, 0, pi)),
        ),
        compiler_params=pltpu.CompilerParams(
            dimension_semantics=("parallel", "parallel")),
    )(x_flat, bt)

    # Drop pixel padding, restore spatial dims (reshape only — no transpose/concat).
    return out_flat[:, :, :wh].reshape(b, 2 * m, w, h)


if __name__ == "__main__":
    # Deterministic parameters & inputs.
    num_input_channels = 4
    mapping_size = 32
    scale = 10.0
    B, W, H = 2, 16, 16

    key = jax.random.PRNGKey(0)
    kx, kb = jax.random.split(key)
    x = jax.random.normal(kx, (B, num_input_channels, W, H), dtype=jnp.float32)
    # _B = randn(C, M) * scale  (deterministic synthetic init)
    b_mat = jax.random.normal(kb, (num_input_channels, mapping_size),
                              dtype=jnp.float32) * scale

    out = gaussian_fourier_feature_transform(x, b_mat)
    out = jax.block_until_ready(out)
    assert out.shape == (B, 2 * mapping_size, W, H), out.shape

    # Plain-JAX reference (mirrors the PyTorch forward) for sanity.
    x_pix = jnp.transpose(x, (0, 2, 3, 1)).reshape(-1, num_input_channels)
    proj = 2.0 * math.pi * (x_pix @ b_mat)
    ref = jnp.concatenate(
        [jnp.sin(proj).reshape(B, W, H, mapping_size).transpose(0, 3, 1, 2),
         jnp.cos(proj).reshape(B, W, H, mapping_size).transpose(0, 3, 1, 2)],
        axis=1)
    assert jnp.max(jnp.abs(out - ref)) < 3e-4

    print("KERNEL_OK")
</pallas_src>

<mosaic_0001>
module attributes {stable_mosaic.version = 11 : i64} {
  func.func @gfft_kernel(%arg0: i32, %arg1: i32, %arg2: memref<1x4x256xf32, #tpu.memory_space<vmem>>, %arg3: memref<32x4xf32, #tpu.memory_space<vmem>>, %arg4: memref<1x64x256xf32, #tpu.memory_space<vmem>>) attributes {dimension_semantics = [#tpu.dimension_semantics<parallel>, #tpu.dimension_semantics<parallel>], iteration_bounds = array<i64: 2, 1>, scalar_prefetch = 0 : i64, scratch_operands = 0 : i64, tpu.core_type = #tpu.core_type<tc>, window_params = [{transform_indices = @transform_0, window_bounds = array<i64: 1, 4, 256>}, {pipeline_mode = #tpu.pipeline_mode<synchronous>, transform_indices = @transform_1, window_bounds = array<i64: 32, 4>}, {transform_indices = @transform_2, window_bounds = array<i64: 1, 64, 256>}]} {
    %c0 = arith.constant 0 : index
    %c0_0 = arith.constant 0 : index
    %0 = vector.load %arg3[%c0, %c0_0] : memref<32x4xf32, #tpu.memory_space<vmem>>, vector<32x4xf32>
    %c0_1 = arith.constant 0 : index
    %c0_2 = arith.constant 0 : index
    %c0_3 = arith.constant 0 : index
    %1 = vector.load %arg2[%c0_1, %c0_2, %c0_3] : memref<1x4x256xf32, #tpu.memory_space<vmem>>, vector<1x4x256xf32>
    %2 = vector.shape_cast %1 : vector<1x4x256xf32> to vector<4x256xf32>
    %cst = arith.constant dense<0.000000e+00> : vector<32x256xf32>
    %3 = tpu.matmul %0, %2, %cst {dimension_numbers = #tpu.dot_dimension_numbers<[1], [0], [0], [1], [0, 0, 1, 1], [], []>} : vector<32x4xf32>, vector<4x256xf32>, vector<32x256xf32> -> vector<32x256xf32>
    %cst_4 = arith.constant 6.28318548 : f32
    %4 = vector.broadcast %cst_4 : f32 to vector<32x256xf32>
    %5 = arith.mulf %4, %3 : vector<32x256xf32>
    %6 = math.sin %5 : vector<32x256xf32>
    %c0_5 = arith.constant 0 : index
    %c0_6 = arith.constant 0 : index
    %c0_7 = arith.constant 0 : index
    %7 = vector.load %arg4[%c0_5, %c0_6, %c0_7] : memref<1x64x256xf32, #tpu.memory_space<vmem>>, vector<1x32x256xf32>
    %8 = vector.shape_cast %7 : vector<1x32x256xf32> to vector<32x256xf32>
    %9 = vector.shape_cast %6 : vector<32x256xf32> to vector<1x32x256xf32>
    tpu.vector_store %arg4[%c0_5, %c0_6, %c0_7], %9 {strides = array<i32>} : memref<1x64x256xf32, #tpu.memory_space<vmem>>, vector<1x32x256xf32>,
    %10 = math.cos %5 : vector<32x256xf32>
    %c0_8 = arith.constant 0 : index
    %c32 = arith.constant 32 : index
    %c0_9 = arith.constant 0 : index
    %11 = vector.load %arg4[%c0_8, %c32, %c0_9] : memref<1x64x256xf32, #tpu.memory_space<vmem>>, vector<1x32x256xf32>
    %12 = vector.shape_cast %11 : vector<1x32x256xf32> to vector<32x256xf32>
    %13 = vector.shape_cast %10 : vector<32x256xf32> to vector<1x32x256xf32>
    tpu.vector_store %arg4[%c0_8, %c32, %c0_9], %13 {strides = array<i32>} : memref<1x64x256xf32, #tpu.memory_space<vmem>>, vector<1x32x256xf32>,
    return
  }
  func.func @transform_0(%arg0: i32, %arg1: i32) -> (i32, i32, i32) {
    %c0_i32 = arith.constant 0 : i32
    %c0_i32_0 = arith.constant 0 : i32
    return %arg0, %c0_i32, %arg1 : i32, i32, i32
  }
  func.func @transform_1(%arg0: i32, %arg1: i32) -> (i32, i32) {
    %c0_i32 = arith.constant 0 : i32
    %c0_i32_0 = arith.constant 0 : i32
    %c0_i32_1 = arith.constant 0 : i32
    return %c0_i32, %c0_i32_0 : i32, i32
  }
  func.func @transform_2(%arg0: i32, %arg1: i32) -> (i32, i32, i32) {
    %c0_i32 = arith.constant 0 : i32
    %c0_i32_0 = arith.constant 0 : i32
    return %arg0, %c0_i32, %arg1 : i32, i32, i32
  }
}

</mosaic_0001>

<llo_original>
// kernel: tpu_custom_call.1
$region0: #{tpu_custom_call.1}
  #allocation0 [shape = 'u32[]', space=smem, size = 0x4, offset = 0x4, fixed_abs, tag = 'smem constant byte address 0x4 - core index']
  #allocation1 [shape = 'u32[144,128]{1,0:T(1,128)}', space=vmem, size = 0x12000, scoped, tag = 'internal scratch']
  %s0 = inlined_call_operand.vmem [shape: f32[2,4,256], index: 0, kind: input, shape index: {}]
  %s1 = inlined_call_operand.vmem [shape: f32[32,4], index: 1, kind: input, shape index: {}]
  %s2 = inlined_call_operand.hbm [shape: f32[2,64,256], index: 2, kind: output, shape index: {}]
  %s3 = sld [smem:[#allocation0]]
  $region41: #{tpu_custom_call.1} parent=0
    _
  %s5 = ssub.s32 1, %s3
  %s6 = scalar_select 0, %s5, %s3
  $region1: #{tpu_custom_call.1} parent=0
    #allocation2 [shape = 'u8[131072]{0}', space=vmem, size = 0x20000, scoped, tag = 'output window, operand 0']
    #allocation3 [shape = 's32[2]{0}', space=sflag, size = 0x8, scoped, tag = 'scoped memory for tpu_custom_call.1']
    %7 = vsyncpa [#allocation3], 0
    %s8 = scalar_lea.sflag [#allocation3], 1
    %9 = vsyncpa %s8, 0
    loop: start=0, step=1, limit=4
    $region2: #{tpu_custom_call.1} parent=1 // loop_pre_header
      _
    $region3: #{tpu_custom_call.1} parent=1 // loop_header
      %s11 = sphi 0, %s15
      %p12 = scmp.ge.s32.totalorder %s11, 4
      %s18 = sphi 0, %s30
      %s19 = sphi 0, %s26
      %s20 = sphi 0, %s18
      %s21 = sphi 0, %s19
      %s22 = sphi 0, %s20
      %s23 = sphi 0, %s21
      %s35 = sphi 0, %s37
      %s38 = sphi 0, %s35
      %s39 = sphi 0, %s38
      %s55 = sphi 0, %s39
      %s59 = sphi 0, %s59
      %s61 = sphi 0, %s59
      %s62 = sphi 0, %s61
      %s76 = sphi 0, %s62
      %s84 = sphi 0, %s86
      %s87 = sphi 0, %s84
      %s88 = sphi 0, %s87
      %s104 = sphi 0, %s88
    $region4: #{tpu_custom_call.1} parent=1 // loop_header_branch
      %14 = sbr.rel (%p12) target = $region8
    $region5: #{tpu_custom_call.1} parent=1 // loop_body
      %s16 = ssub.s32 %s11, 1
      %s17 = ssub.s32 %s11, 2
      %s24 = sadd.s32 1, %s19
      %p25 = scmp.ge.s32.totalorder %s24, 1
      %s26 = scalar_select %p25, 0, %s24
      %s27 = sadd.s32 1, %s18
      %s28 = scalar_select %p25, %s27, %s18
      %p29 = scmp.ge.s32.totalorder %s28, 2
      %s30 = scalar_select %p29, 0, %s28
      %s31 = ssub.s32 %s18, %s30
      %s32 = ssub.s32 %s19, %s26
      %s33 = sor.u32 %s31, %s32
      %p34 = scmp.eq.s32.totalorder %s33, 0
      %s36 = sadd.s32 %s35, 1
      %s37 = scalar_select %p34, %s35, %s36
      %p40 = pneg %p34
      %p41 = scmp.eq.s32.totalorder %s11, 1
      %p42 = por %p40, %p41
      %p43 = scmp.ne.s32.totalorder %s35, %s38
      %p44 = scmp.eq.s32.totalorder %s11, 0
      %p45 = por %p43, %p44
      %p46 = scmp.ne.s32.totalorder %s35, %s38
      %p47 = scmp.eq.s32.totalorder %s16, 1
      %p48 = por %p46, %p47
      %p49 = scmp.ne.s32.totalorder %s38, %s39
      %p50 = scmp.eq.s32.totalorder %s16, 0
      %p51 = por %p49, %p50
      %p52 = scmp.ne.s32.totalorder %s38, %s39
      %p53 = scmp.eq.s32.totalorder %s17, 1
      %p54 = por %p52, %p53
      %p56 = scmp.ne.s32.totalorder %s39, %s55
      %p57 = scmp.eq.s32.totalorder %s17, 0
      %p58 = por %p56, %p57
      %s60 = sadd.s32 %s59, 1
      %p63 = scmp.eq.s32.totalorder %s11, 1
      %p64 = scmp.ne.s32.totalorder %s59, %s61
      %p65 = scmp.eq.s32.totalorder %s11, 0
      %p66 = por %p64, %p65
      %p67 = scmp.ne.s32.totalorder %s59, %s61
      %p68 = scmp.eq.s32.totalorder %s16, 1
      %p69 = por %p67, %p68
      %p70 = scmp.ne.s32.totalorder %s61, %s62
      %p71 = scmp.eq.s32.totalorder %s16, 0
      %p72 = por %p70, %p71
      %p73 = scmp.ne.s32.totalorder %s61, %s62
      %p74 = scmp.eq.s32.totalorder %s17, 1
      %p75 = por %p73, %p74
      %p77 = scmp.ne.s32.totalorder %s62, %s76
      %p78 = scmp.eq.s32.totalorder %s17, 0
      %p79 = por %p77, %p78
      %s80 = ssub.s32 %s18, %s30
      %s81 = ssub.s32 %s19, %s26
      %s82 = sor.u32 %s80, %s81
      %p83 = scmp.eq.s32.totalorder %s82, 0
      %s85 = sadd.s32 %s84, 1
      %s86 = scalar_select %p83, %s84, %s85
      %p89 = pneg %p83
      %p90 = scmp.eq.s32.totalorder %s11, 1
      %p91 = por %p89, %p90
      %p92 = scmp.ne.s32.totalorder %s84, %s87
      %p93 = scmp.eq.s32.totalorder %s11, 0
      %p94 = por %p92, %p93
      %p95 = scmp.ne.s32.totalorder %s84, %s87
      %p96 = scmp.eq.s32.totalorder %s16, 1
      %p97 = por %p95, %p96
      %p98 = scmp.ne.s32.totalorder %s87, %s88
      %p99 = scmp.eq.s32.totalorder %s16, 0
      %p100 = por %p98, %p99
      %p101 = scmp.ne.s32.totalorder %s87, %s88
      %p102 = scmp.eq.s32.totalorder %s17, 1
      %p103 = por %p101, %p102
      %p105 = scmp.ne.s32.totalorder %s88, %s104
      %p106 = scmp.eq.s32.totalorder %s17, 0
      %p107 = por %p105, %p106
      %p108 = scmp.le.s32.totalorder 1, %s11
      %p109 = scmp.lt.s32.totalorder %s11, 3
      %p110 = pnand %p108, %p109
      %p111 = pneg %p110
      // Predicated region
      $region9: #{tpu_custom_call.1} parent=5 // pred_check
        _
      $region10: #{tpu_custom_call.1} parent=5 // pred_check_branch
        %113 = sbr.rel (%p110) target = $region12
      $region11: #{tpu_custom_call.1} parent=5 // pred_region
        %s114 = ssub.s32 %s11, 1
        // Predicated region
        $region13: #{tpu_custom_call.1} parent=11 // pred_check
          %p115 = pneg %p72
        $region14: #{tpu_custom_call.1} parent=11 // pred_check_branch
          %117 = sbr.rel (%p115) target = $region16
        $region15: #{tpu_custom_call.1} parent=11 // pred_region
          _
        $region16: #{tpu_custom_call.1} parent=11 // pred_fallthru
          _
      $region12: #{tpu_custom_call.1} parent=5 // pred_fallthru
        _
      %p118 = scmp.lt.s32.totalorder %s11, 2
      // Predicated region
      $region17: #{tpu_custom_call.1} parent=5 // pred_check
        %p119 = pneg %p118
      $region18: #{tpu_custom_call.1} parent=5 // pred_check_branch
        %121 = sbr.rel (%p119) target = $region20
      $region19: #{tpu_custom_call.1} parent=5 // pred_region
        // Predicated region
        $region21: #{tpu_custom_call.1} parent=19 // pred_check
          %p122 = pneg %p45
        $region22: #{tpu_custom_call.1} parent=19 // pred_check_branch
          %124 = sbr.rel (%p122) target = $region24
        $region23: #{tpu_custom_call.1} parent=19 // pred_region
          %s125 = smul.u32 2, %s19
          %p126 = scmp.lt.s32.totalorder %s18, 1
          %s127 = scalar_select %p126, %s18, 1
          %p128 = scmp.lt.s32.totalorder %s125, 1
          %s129 = scalar_select %p128, %s125, 1
          %s130 = smul.addr %s127, 2
          %s131 = sadd.s32 %s129, %s130
          %s132 = smul.addr %s131, 4
          %s133 = scalar_lea.vmem %s0, %s132
          %s134 = smul.u32 2, %s19
        $region24: #{tpu_custom_call.1} parent=19 // pred_fallthru
          _
      $region20: #{tpu_custom_call.1} parent=5 // pred_fallthru
        _
      %p135 = scmp.le.s32.totalorder 1, %s11
      %p136 = scmp.lt.s32.totalorder %s11, 3
      %p137 = pnand %p135, %p136
      %p138 = pneg %p137
      // Predicated region
      $region25: #{tpu_custom_call.1} parent=5 // pred_check
        _
      $region26: #{tpu_custom_call.1} parent=5 // pred_check_branch
        %140 = sbr.rel (%p137) target = $region28
      $region27: #{tpu_custom_call.1} parent=5 // pred_region
        %s141 = ssub.s32 %s11, 1
        %s142 = smul.u32 2, %s21
        %p143 = scmp.lt.s32.totalorder %s20, 1
        %s144 = scalar_select %p143, %s20, 1
        %p145 = scmp.lt.s32.totalorder %s142, 1
        %s146 = scalar_select %p145, %s142, 1
        %s147 = smul.addr %s144, 2
        %s148 = sadd.s32 %s146, %s147
        %s149 = smul.addr %s148, 4
        %s150 = scalar_lea.vmem %s0, %s149
        %p151 = pneg %p51
        %p152 = pneg %p48
        %p153 = pneg %p72
        %p154 = pneg %p69
        %p155 = pneg %p100
        %p156 = pneg %p97
        %s157 = sand.u32 %s87, 1
        %s158 = scalar_lea.sflag [#allocation3], %s157
        %s159 = sand.u32 %s87, 1
        %s160 = smul.addr %s159, 128
        %s161 = scalar_lea.vmem [#allocation2], %s160
        %s162 = smul.u32 2, %s21
        %p163 = scmp.lt.s32.totalorder %s20, 1
        %s164 = scalar_select %p163, %s20, 1
        %p165 = scmp.lt.s32.totalorder %s162, 1
        %s166 = scalar_select %p165, %s162, 1
        %s167 = smul.addr %s164, 2
        %s168 = sadd.s32 %s166, %s167
        %s169 = smul.addr %s168, 4
        %s170 = scalar_lea.vmem %s0, %s169
        %s171 = smul.u32 2, %s21
        %s172 = smul.u32 2, %s21
        %v173 = vld [vmem:[%s1] sm:$0xff]
        %v174 = vld [vmem:[%s1 + $0x8] sm:$0xff]
        %v175 = vld [vmem:[%s1 + $0x10] sm:$0xff]
        %v176 = vld [vmem:[%s1 + $0x18] sm:$0xff]
        %v177 = vld [vmem:[%s170] sm:$0xff]
        %v179 = vcombine.high %v177, %v177
        %vm180 = vcmask 31744
        %v182 = vsel %vm180, %v173, 0
        %v185 = vsel %vm180, %v174, 0
        %v188 = vsel %vm180, %v175, 0
        %v191 = vsel %vm180, %v176, 0
        %vm193 = vcmask 1043456
        %v194 = vsel %vm193, %v177, 0
        %v196 = vsel %vm193, %v179, 0
        %198 = vmatprep.subr.mxu0 0.0
        %199 = vmatpush1.msra.mxu0 0.0
        %200 = vmatprep.subr.mxu0 0.0
        %201 = vmatpush1.msra.mxu0 0.0
        %202 = vmatprep.subr.mxu0 0.0
        %203 = vmatpush1.msra.mxu0 0.0
        %204 = vmatprep.subr.mxu0 0.0
        %205 = vmatpush1.msra.mxu0 0.0
        %206 = vmatprep.subr.mxu0 0.0
        %207 = vmatpush1.msra.mxu0 0.0
        %208 = vmatprep.subr.mxu0 0.0
        %209 = vmatpush1.msra.mxu0 0.0
        %210 = vmatprep.subr.mxu0 0.0
        %211 = vmatpush1.msra.mxu0 0.0
        %212 = vmatprep.subr.mxu0 0.0
        %213 = vmatpush1.msra.mxu0 0.0
        %214 = vmatprep.subr.mxu0 0.0
        %215 = vmatpush1.msra.mxu0 0.0
        %216 = vmatprep.subr.mxu0 0.0
        %217 = vmatpush1.msra.mxu0 0.0
        %218 = vmatprep.subr.mxu0 0.0
        %219 = vmatpush1.msra.mxu0 0.0
        %220 = vmatprep.subr.mxu0 0.0
        %221 = vmatpush1.msra.mxu0 0.0
        %222 = vmatprep.subr.mxu0 0.0
        %223 = vmatpush1.msra.mxu0 0.0
        %224 = vmatprep.subr.mxu0 0.0
        %225 = vmatpush1.msra.mxu0 0.0
        %226 = vmatprep.subr.mxu0 0.0
        %227 = vmatpush1.msra.mxu0 0.0
        %228 = vmatprep.subr.mxu0 %v196
        %229 = vmatpush1.msra.mxu0 %v194
        %230 = vmatprep.subr.mxu0 0.0
        %231 = vmatpush2.msra.mxu0 0.0
        %232 = vmatprep.subr.mxu0 0.0
        %233 = vmatpush2.msra.mxu0 0.0
        %234 = vmatprep.subr.mxu0 0.0
        %235 = vmatpush2.msra.mxu0 0.0
        %236 = vmatprep.subr.mxu0 0.0
        %237 = vmatpush2.msra.mxu0 0.0
        %238 = vmatprep.subr.mxu0 0.0
        %239 = vmatpush2.msra.mxu0 0.0
        %240 = vmatprep.subr.mxu0 0.0
        %241 = vmatpush2.msra.mxu0 0.0
        %242 = vmatprep.subr.mxu0 0.0
        %243 = vmatpush2.msra.mxu0 0.0
        %244 = vmatprep.subr.mxu0 0.0
        %245 = vmatpush2.msra.mxu0 0.0
        %246 = vmatprep.subr.mxu0 0.0
        %247 = vmatpush2.msra.mxu0 0.0
        %248 = vmatprep.subr.mxu0 0.0
        %249 = vmatpush2.msra.mxu0 0.0
        %250 = vmatprep.subr.mxu0 0.0
        %251 = vmatpush2.msra.mxu0 0.0
        %252 = vmatprep.subr.mxu0 0.0
        %253 = vmatpush2.msra.mxu0 0.0
        %254 = vmatprep.subr.mxu0 0.0
        %255 = vmatpush2.msra.mxu0 0.0
        %256 = vmatprep.subr.mxu0 0.0
        %257 = vmatpush2.msra.mxu0 0.0
        %258 = vmatprep.subr.mxu0 0.0
        %259 = vmatpush2.msra.mxu0 0.0
        %260 = vmatprep.subr.mxu0 0.0
        %261 = vmatpush2.msra.mxu0 0.0
        %262 = vmatprep.mubr.f32.mxu0 0.0
        %263 = vmatmul.mubr.f32.gmra.mxu0 %v182
        %v264 = vpop.f32.mrf.mxu0
        %v265 = vadd.f32 0.0, %v264
        %v266 = vpop.f32.mrf.mxu0
        %v267 = vadd.f32 0.0, %v266
        %268 = vmatprep.mubr.f32.mxu0 0.0
        %269 = vmatmul.mubr.f32.gmra.mxu0 %v185
        %v270 = vpop.f32.mrf.mxu0
        %v271 = vadd.f32 0.0, %v270
        %v272 = vpop.f32.mrf.mxu0
        %v273 = vadd.f32 0.0, %v272
        %274 = vmatprep.mubr.f32.mxu0 0.0
        %275 = vmatmul.mubr.f32.gmra.mxu0 %v188
        %v276 = vpop.f32.mrf.mxu0
        %v277 = vadd.f32 0.0, %v276
        %v278 = vpop.f32.mrf.mxu0
        %v279 = vadd.f32 0.0, %v278
        %280 = vmatprep.mubr.f32.mxu0 0.0
        %281 = vmatmul.mubr.f32.gmra.mxu0 %v191
        %v282 = vpop.f32.mrf.mxu0
        %v283 = vadd.f32 0.0, %v282
        %v284 = vpop.f32.mrf.mxu0
        %v285 = vadd.f32 0.0, %v284
        %286 = vdwg.mxu0
        %v287 = vmul.f32 %v265, 6.2831855
        %v288 = vmul.f32 %v267, 6.2831855
        %v289 = vmul.f32 %v271, 6.2831855
        %v290 = vmul.f32 %v273, 6.2831855
        %v291 = vmul.f32 %v277, 6.2831855
        %v292 = vmul.f32 %v279, 6.2831855
        %v293 = vmul.f32 %v283, 6.2831855
        %v294 = vmul.f32 %v285, 6.2831855
        %v295 = vand.u32 2147483647, %v287
        %vm296 = vcmp.le.f32.partialorder %v295, 0.7853982
        %vm297 = vcmp.lt.s32.totalorder %v287, 0
        %v298 = vand.u32 %v287, 2139095040
        %v299 = vshrl.u32 %v298, 23
        %v300 = vsub.s32 %v299, 127
        %v301 = vand.u32 2147483647, %v287
        %v302 = vand.u32 %v301, 8388607
        %v303 = vor.u32 %v302, 8388608
        %v304 = vsub.s32 0, %v303
        %v305 = vadd.s32 %v300, 1
        %vm306 = vcmp.gt.s32.totalorder %v305, 0
        %v307 = vsel %vm306, %v305, 0
        %v308 = vshrl.u32 %v307, 5
        %v309 = vand.u32 %v307, 31
        %v310 = vsub.s32 32, %v309
        %v311 = vshrl.u32 683565275, %v310
        %v312 = vshll.u32 683565275, %v309
        %v313 = vshrl.u32 2475754826, %v310
        %v314 = vor.u32 %v312, %v313
        %v315 = vshll.u32 2475754826, %v309
        %v316 = vshrl.u32 2131351028, %v310
        %v317 = vor.u32 %v315, %v316
        %v318 = vshll.u32 2131351028, %v309
        %v319 = vshrl.u32 2102212464, %v310
        %v320 = vor.u32 %v318, %v319
        %v321 = vshll.u32 2102212464, %v309
        %v322 = vshrl.u32 920167782, %v310
        %v323 = vor.u32 %v321, %v322
        %v324 = vshll.u32 920167782, %v309
        %v325 = vshrl.u32 1326507024, %v310
        %v326 = vor.u32 %v324, %v325
        %vm327 = vcmp.lt.s32.totalorder %v308, 1
        %vm328 = vcmp.lt.s32.totalorder %v308, 2
        %vm329 = vcmp.lt.s32.totalorder %v308, 3
        %vm330 = vcmp.lt.s32.totalorder %v308, 4
        %v331 = vsel %vm327, %v311, %v314
        %v332 = vsel %vm330, %v320, 2102212464
        %v333 = vsel %vm329, %v317, %v332
        %v334 = vsel %vm328, %v331, %v333
        %v335 = vsel %vm327, %v314, %v317
        %v336 = vsel %vm330, %v323, 920167782
        %v337 = vsel %vm329, %v320, %v336
        %v338 = vsel %vm328, %v335, %v337
        %v339 = vsel %vm327, %v317, %v320
        %v340 = vsel %vm330, %v326, 1326507024
        %v341 = vsel %vm329, %v323, %v340
        %v342 = vsel %vm328, %v339, %v341
        %v343 = vshll.u32 %v303, 8
        %v344 = vmul.u32.u64.compose %v343, %v342
        %v345 = vextract.low.u32 %v344
        %v346 = vextract.high.u32 %v344
        %v347 = vmul.u32.u64.compose %v343, %v338
        %v348 = vextract.low.u32 %v347
        %v349 = vextract.high.u32 %v347
        %v350 = vmul.u32 %v343, %v334
        %v351 = vadd.s32 %v346, %v348
        %vm352 = vc.u32 %v346, %v348
        %v353 = vadd.s32 %v349, 1
        %v354 = vsel %vm352, %v353, %v349
        %v355 = vadd.s32 %v350, %v354
        %v356 = vadd.s32 %v355, 536870912
        %v357 = vshrl.u32 %v356, 30
        %v358 = vshll.u32 %v357, 30
        %v359 = vsub.s32 %v355, %v358
        %vm360 = vcmp.lt.s32.totalorder %v359, 0
        %v361 = vsub.s32 0, %v359
        %v362 = vsel %vm360, %v361, %v359
        %v363 = vclz %v362
        %v364 = vsub.s32 %v363, 2
        %vm365 = vcmp.gt.s32.totalorder 0, %v364
        %v366 = vsel %vm365, 0, %v364
        %v367 = vsub.s32 32, %v366
        %v368 = vshll.u32 %v359, %v366
        %v369 = vshrl.u32 %v351, %v367
        %v370 = vor.u32 %v368, %v369
        %v371 = vsub.s32 4294967266, %v366
        %v372 = vadd.s32 %v371, 127
        %v373 = vshll.u32 %v372, 23
        %v374 = vor.u32 4788187, %v373
        %v375 = vand.u32 2147483647, %v374
        %v377 = vcvt.s32.f32 %v370
        %v378 = vmul.f32 %v377, %v375
        %v379 = vxor.u32 %v378, 2147483648
        %v380 = vsel %vm297, %v379, %v378
        %v381 = vsub.s32 4, %v357
        %v382 = vsel %vm297, %v381, %v357
        %v383 = vsel %vm296, %v287, %v380
        %v384 = vsel %vm296, 0, %v382
        %v385 = vcosq.f32.pop %v383
        %v386 = vsinq.f32.pop %v383
        %vm387 = vweird.f32 %v287
        %v388 = vadd.s32 %v384, 3
        %v389 = vand.u32 %v388, 3
        %vm390 = vcmp.lt.s32.totalorder %v389, 2
        %vm391 = vcmp.eq.s32.totalorder %v389, 0
        %v392 = vxor.u32 %v386, 2147483648
        %v393 = vsel %vm391, %v385, %v392
        %vm394 = vcmp.eq.s32.totalorder %v389, 2
        %v395 = vxor.u32 %v385, 2147483648
        %v396 = vsel %vm394, %v395, %v386
        %v397 = vsel %vm390, %v393, %v396
        %v398 = vsel %vm387, nan, %v397
        %v399 = vand.u32 2147483647, %v288
        %vm400 = vcmp.le.f32.partialorder %v399, 0.7853982
        %vm401 = vcmp.lt.s32.totalorder %v288, 0
        %v402 = vand.u32 %v288, 2139095040
        %v403 = vshrl.u32 %v402, 23
        %v404 = vsub.s32 %v403, 127
        %v405 = vand.u32 2147483647, %v288
        %v406 = vand.u32 %v405, 8388607
        %v407 = vor.u32 %v406, 8388608
        %v408 = vsub.s32 0, %v407
        %v409 = vadd.s32 %v404, 1
        %vm410 = vcmp.gt.s32.totalorder %v409, 0
        %v411 = vsel %vm410, %v409, 0
        %v412 = vshrl.u32 %v411, 5
        %v413 = vand.u32 %v411, 31
        %v414 = vsub.s32 32, %v413
        %v415 = vshrl.u32 683565275, %v414
        %v416 = vshll.u32 683565275, %v413
        %v417 = vshrl.u32 2475754826, %v414
        %v418 = vor.u32 %v416, %v417
        %v419 = vshll.u32 2475754826, %v413
        %v420 = vshrl.u32 2131351028, %v414
        %v421 = vor.u32 %v419, %v420
        %v422 = vshll.u32 2131351028, %v413
        %v423 = vshrl.u32 2102212464, %v414
        %v424 = vor.u32 %v422, %v423
        %v425 = vshll.u32 2102212464, %v413
        %v426 = vshrl.u32 920167782, %v414
        %v427 = vor.u32 %v425, %v426
        %v428 = vshll.u32 920167782, %v413
        %v429 = vshrl.u32 1326507024, %v414
        %v430 = vor.u32 %v428, %v429
        %vm431 = vcmp.lt.s32.totalorder %v412, 1
        %vm432 = vcmp.lt.s32.totalorder %v412, 2
        %vm433 = vcmp.lt.s32.totalorder %v412, 3
        %vm434 = vcmp.lt.s32.totalorder %v412, 4
        %v435 = vsel %vm431, %v415, %v418
        %v436 = vsel %vm434, %v424, 2102212464
        %v437 = vsel %vm433, %v421, %v436
        %v438 = vsel %vm432, %v435, %v437
        %v439 = vsel %vm431, %v418, %v421
        %v440 = vsel %vm434, %v427, 920167782
        %v441 = vsel %vm433, %v424, %v440
        %v442 = vsel %vm432, %v439, %v441
        %v443 = vsel %vm431, %v421, %v424
        %v444 = vsel %vm434, %v430, 1326507024
        %v445 = vsel %vm433, %v427, %v444
        %v446 = vsel %vm432, %v443, %v445
        %v447 = vshll.u32 %v407, 8
        %v448 = vmul.u32.u64.compose %v447, %v446
        %v449 = vextract.low.u32 %v448
        %v450 = vextract.high.u32 %v448
        %v451 = vmul.u32.u64.compose %v447, %v442
        %v452 = vextract.low.u32 %v451
        %v453 = vextract.high.u32 %v451
        %v454 = vmul.u32 %v447, %v438
        %v455 = vadd.s32 %v450, %v452
        %vm456 = vc.u32 %v450, %v452
        %v457 = vadd.s32 %v453, 1
        %v458 = vsel %vm456, %v457, %v453
        %v459 = vadd.s32 %v454, %v458
        %v460 = vadd.s32 %v459, 536870912
        %v461 = vshrl.u32 %v460, 30
        %v462 = vshll.u32 %v461, 30
        %v463 = vsub.s32 %v459, %v462
        %vm464 = vcmp.lt.s32.totalorder %v463, 0
        %v465 = vsub.s32 0, %v463
        %v466 = vsel %vm464, %v465, %v463
        %v467 = vclz %v466
        %v468 = vsub.s32 %v467, 2
        %vm469 = vcmp.gt.s32.totalorder 0, %v468
        %v470 = vsel %vm469, 0, %v468
        %v471 = vsub.s32 32, %v470
        %v472 = vshll.u32 %v463, %v470
        %v473 = vshrl.u32 %v455, %v471
        %v474 = vor.u32 %v472, %v473
        %v475 = vsub.s32 4294967266, %v470
        %v476 = vadd.s32 %v475, 127
        %v477 = vshll.u32 %v476, 23
        %v478 = vor.u32 4788187, %v477
        %v479 = vand.u32 2147483647, %v478
        %v481 = vcvt.s32.f32 %v474
        %v482 = vmul.f32 %v481, %v479
        %v483 = vxor.u32 %v482, 2147483648
        %v484 = vsel %vm401, %v483, %v482
        %v485 = vsub.s32 4, %v461
        %v486 = vsel %vm401, %v485, %v461
        %v487 = vsel %vm400, %v288, %v484
        %v488 = vsel %vm400, 0, %v486
        %v489 = vcosq.f32.pop %v487
        %v490 = vsinq.f32.pop %v487
        %vm491 = vweird.f32 %v288
        %v492 = vadd.s32 %v488, 3
        %v493 = vand.u32 %v492, 3
        %vm494 = vcmp.lt.s32.totalorder %v493, 2
        %vm495 = vcmp.eq.s32.totalorder %v493, 0
        %v496 = vxor.u32 %v490, 2147483648
        %v497 = vsel %vm495, %v489, %v496
        %vm498 = vcmp.eq.s32.totalorder %v493, 2
        %v499 = vxor.u32 %v489, 2147483648
        %v500 = vsel %vm498, %v499, %v490
        %v501 = vsel %vm494, %v497, %v500
        %v502 = vsel %vm491, nan, %v501
        %v503 = vand.u32 2147483647, %v289
        %vm504 = vcmp.le.f32.partialorder %v503, 0.7853982
        %vm505 = vcmp.lt.s32.totalorder %v289, 0
        %v506 = vand.u32 %v289, 2139095040
        %v507 = vshrl.u32 %v506, 23
        %v508 = vsub.s32 %v507, 127
        %v509 = vand.u32 2147483647, %v289
        %v510 = vand.u32 %v509, 8388607
        %v511 = vor.u32 %v510, 8388608
        %v512 = vsub.s32 0, %v511
        %v513 = vadd.s32 %v508, 1
        %vm514 = vcmp.gt.s32.totalorder %v513, 0
        %v515 = vsel %vm514, %v513, 0
        %v516 = vshrl.u32 %v515, 5
        %v517 = vand.u32 %v515, 31
        %v518 = vsub.s32 32, %v517
        %v519 = vshrl.u32 683565275, %v518
        %v520 = vshll.u32 683565275, %v517
        %v521 = vshrl.u32 2475754826, %v518
        %v522 = vor.u32 %v520, %v521
        %v523 = vshll.u32 2475754826, %v517
        %v524 = vshrl.u32 2131351028, %v518
        %v525 = vor.u32 %v523, %v524
        %v526 = vshll.u32 2131351028, %v517
        %v527 = vshrl.u32 2102212464, %v518
        %v528 = vor.u32 %v526, %v527
        %v529 = vshll.u32 2102212464, %v517
        %v530 = vshrl.u32 920167782, %v518
        %v531 = vor.u32 %v529, %v530
        %v532 = vshll.u32 920167782, %v517
        %v533 = vshrl.u32 1326507024, %v518
        %v534 = vor.u32 %v532, %v533
        %vm535 = vcmp.lt.s32.totalorder %v516, 1
        %vm536 = vcmp.lt.s32.totalorder %v516, 2
        %vm537 = vcmp.lt.s32.totalorder %v516, 3
        %vm538 = vcmp.lt.s32.totalorder %v516, 4
        %v539 = vsel %vm535, %v519, %v522
        %v540 = vsel %vm538, %v528, 2102212464
        %v541 = vsel %vm537, %v525, %v540
        %v542 = vsel %vm536, %v539, %v541
        %v543 = vsel %vm535, %v522, %v525
        %v544 = vsel %vm538, %v531, 920167782
        %v545 = vsel %vm537, %v528, %v544
        %v546 = vsel %vm536, %v543, %v545
        %v547 = vsel %vm535, %v525, %v528
        %v548 = vsel %vm538, %v534, 1326507024
        %v549 = vsel %vm537, %v531, %v548
        %v550 = vsel %vm536, %v547, %v549
        %v551 = vshll.u32 %v511, 8
        %v552 = vmul.u32.u64.compose %v551, %v550
        %v553 = vextract.low.u32 %v552
        %v554 = vextract.high.u32 %v552
        %v555 = vmul.u32.u64.compose %v551, %v546
        %v556 = vextract.low.u32 %v555
        %v557 = vextract.high.u32 %v555
        %v558 = vmul.u32 %v551, %v542
        %v559 = vadd.s32 %v554, %v556
        %vm560 = vc.u32 %v554, %v556
        %v561 = vadd.s32 %v557, 1
        %v562 = vsel %vm560, %v561, %v557
        %v563 = vadd.s32 %v558, %v562
        %v564 = vadd.s32 %v563, 536870912
        %v565 = vshrl.u32 %v564, 30
        %v566 = vshll.u32 %v565, 30
        %v567 = vsub.s32 %v563, %v566
        %vm568 = vcmp.lt.s32.totalorder %v567, 0
        %v569 = vsub.s32 0, %v567
        %v570 = vsel %vm568, %v569, %v567
        %v571 = vclz %v570
        %v572 = vsub.s32 %v571, 2
        %vm573 = vcmp.gt.s32.totalorder 0, %v572
        %v574 = vsel %vm573, 0, %v572
        %v575 = vsub.s32 32, %v574
        %v576 = vshll.u32 %v567, %v574
        %v577 = vshrl.u32 %v559, %v575
        %v578 = vor.u32 %v576, %v577
        %v579 = vsub.s32 4294967266, %v574
        %v580 = vadd.s32 %v579, 127
        %v581 = vshll.u32 %v580, 23
        %v582 = vor.u32 4788187, %v581
        %v583 = vand.u32 2147483647, %v582
        %v585 = vcvt.s32.f32 %v578
        %v586 = vmul.f32 %v585, %v583
        %v587 = vxor.u32 %v586, 2147483648
        %v588 = vsel %vm505, %v587, %v586
        %v589 = vsub.s32 4, %v565
        %v590 = vsel %vm505, %v589, %v565
        %v591 = vsel %vm504, %v289, %v588
        %v592 = vsel %vm504, 0, %v590
        %v593 = vcosq.f32.pop %v591
        %v594 = vsinq.f32.pop %v591
        %vm595 = vweird.f32 %v289
        %v596 = vadd.s32 %v592, 3
        %v597 = vand.u32 %v596, 3
        %vm598 = vcmp.lt.s32.totalorder %v597, 2
        %vm599 = vcmp.eq.s32.totalorder %v597, 0
        %v600 = vxor.u32 %v594, 2147483648
        %v601 = vsel %vm599, %v593, %v600
        %vm602 = vcmp.eq.s32.totalorder %v597, 2
        %v603 = vxor.u32 %v593, 2147483648
        %v604 = vsel %vm602, %v603, %v594
        %v605 = vsel %vm598, %v601, %v604
        %v606 = vsel %vm595, nan, %v605
        %v607 = vand.u32 2147483647, %v290
        %vm608 = vcmp.le.f32.partialorder %v607, 0.7853982
        %vm609 = vcmp.lt.s32.totalorder %v290, 0
        %v610 = vand.u32 %v290, 2139095040
        %v611 = vshrl.u32 %v610, 23
        %v612 = vsub.s32 %v611, 127
        %v613 = vand.u32 2147483647, %v290
        %v614 = vand.u32 %v613, 8388607
        %v615 = vor.u32 %v614, 8388608
        %v616 = vsub.s32 0, %v615
        %v617 = vadd.s32 %v612, 1
        %vm618 = vcmp.gt.s32.totalorder %v617, 0
        %v619 = vsel %vm618, %v617, 0
        %v620 = vshrl.u32 %v619, 5
        %v621 = vand.u32 %v619, 31
        %v622 = vsub.s32 32, %v621
        %v623 = vshrl.u32 683565275, %v622
        %v624 = vshll.u32 683565275, %v621
        %v625 = vshrl.u32 2475754826, %v622
        %v626 = vor.u32 %v624, %v625
        %v627 = vshll.u32 2475754826, %v621
        %v628 = vshrl.u32 2131351028, %v622
        %v629 = vor.u32 %v627, %v628
        %v630 = vshll.u32 2131351028, %v621
        %v631 = vshrl.u32 2102212464, %v622
        %v632 = vor.u32 %v630, %v631
        %v633 = vshll.u32 2102212464, %v621
        %v634 = vshrl.u32 920167782, %v622
        %v635 = vor.u32 %v633, %v634
        %v636 = vshll.u32 920167782, %v621
        %v637 = vshrl.u32 1326507024, %v622
        %v638 = vor.u32 %v636, %v637
        %vm639 = vcmp.lt.s32.totalorder %v620, 1
        %vm640 = vcmp.lt.s32.totalorder %v620, 2
        %vm641 = vcmp.lt.s32.totalorder %v620, 3
        %vm642 = vcmp.lt.s32.totalorder %v620, 4
        %v643 = vsel %vm639, %v623, %v626
        %v644 = vsel %vm642, %v632, 2102212464
        %v645 = vsel %vm641, %v629, %v644
        %v646 = vsel %vm640, %v643, %v645
        %v647 = vsel %vm639, %v626, %v629
        %v648 = vsel %vm642, %v635, 920167782
        %v649 = vsel %vm641, %v632, %v648
        %v650 = vsel %vm640, %v647, %v649
        %v651 = vsel %vm639, %v629, %v632
        %v652 = vsel %vm642, %v638, 1326507024
        %v653 = vsel %vm641, %v635, %v652
        %v654 = vsel %vm640, %v651, %v653
        %v655 = vshll.u32 %v615, 8
        %v656 = vmul.u32.u64.compose %v655, %v654
        %v657 = vextract.low.u32 %v656
        %v658 = vextract.high.u32 %v656
        %v659 = vmul.u32.u64.compose %v655, %v650
        %v660 = vextract.low.u32 %v659
        %v661 = vextract.high.u32 %v659
        %v662 = vmul.u32 %v655, %v646
        %v663 = vadd.s32 %v658, %v660
        %vm664 = vc.u32 %v658, %v660
        %v665 = vadd.s32 %v661, 1
        %v666 = vsel %vm664, %v665, %v661
        %v667 = vadd.s32 %v662, %v666
        %v668 = vadd.s32 %v667, 536870912
        %v669 = vshrl.u32 %v668, 30
        %v670 = vshll.u32 %v669, 30
        %v671 = vsub.s32 %v667, %v670
        %vm672 = vcmp.lt.s32.totalorder %v671, 0
        %v673 = vsub.s32 0, %v671
        %v674 = vsel %vm672, %v673, %v671
        %v675 = vclz %v674
        %v676 = vsub.s32 %v675, 2
        %vm677 = vcmp.gt.s32.totalorder 0, %v676
        %v678 = vsel %vm677, 0, %v676
        %v679 = vsub.s32 32, %v678
        %v680 = vshll.u32 %v671, %v678
        %v681 = vshrl.u32 %v663, %v679
        %v682 = vor.u32 %v680, %v681
        %v683 = vsub.s32 4294967266, %v678
        %v684 = vadd.s32 %v683, 127
        %v685 = vshll.u32 %v684, 23
        %v686 = vor.u32 4788187, %v685
        %v687 = vand.u32 2147483647, %v686
        %v689 = vcvt.s32.f32 %v682
        %v690 = vmul.f32 %v689, %v687
        %v691 = vxor.u32 %v690, 2147483648
        %v692 = vsel %vm609, %v691, %v690
        %v693 = vsub.s32 4, %v669
        %v694 = vsel %vm609, %v693, %v669
        %v695 = vsel %vm608, %v290, %v692
        %v696 = vsel %vm608, 0, %v694
        %v697 = vcosq.f32.pop %v695
        %v698 = vsinq.f32.pop %v695
        %vm699 = vweird.f32 %v290
        %v700 = vadd.s32 %v696, 3
        %v701 = vand.u32 %v700, 3
        %vm702 = vcmp.lt.s32.totalorder %v701, 2
        %vm703 = vcmp.eq.s32.totalorder %v701, 0
        %v704 = vxor.u32 %v698, 2147483648
        %v705 = vsel %vm703, %v697, %v704
        %vm706 = vcmp.eq.s32.totalorder %v701, 2
        %v707 = vxor.u32 %v697, 2147483648
        %v708 = vsel %vm706, %v707, %v698
        %v709 = vsel %vm702, %v705, %v708
        %v710 = vsel %vm699, nan, %v709
        %v711 = vand.u32 2147483647, %v291
        %vm712 = vcmp.le.f32.partialorder %v711, 0.7853982
        %vm713 = vcmp.lt.s32.totalorder %v291, 0
        %v714 = vand.u32 %v291, 2139095040
        %v715 = vshrl.u32 %v714, 23
        %v716 = vsub.s32 %v715, 127
        %v717 = vand.u32 2147483647, %v291
        %v718 = vand.u32 %v717, 8388607
        %v719 = vor.u32 %v718, 8388608
        %v720 = vsub.s32 0, %v719
        %v721 = vadd.s32 %v716, 1
        %vm722 = vcmp.gt.s32.totalorder %v721, 0
        %v723 = vsel %vm722, %v721, 0
        %v724 = vshrl.u32 %v723, 5
        %v725 = vand.u32 %v723, 31
        %v726 = vsub.s32 32, %v725
        %v727 = vshrl.u32 683565275, %v726
        %v728 = vshll.u32 683565275, %v725
        %v729 = vshrl.u32 2475754826, %v726
        %v730 = vor.u32 %v728, %v729
        %v731 = vshll.u32 2475754826, %v725
        %v732 = vshrl.u32 2131351028, %v726
        %v733 = vor.u32 %v731, %v732
        %v734 = vshll.u32 2131351028, %v725
        %v735 = vshrl.u32 2102212464, %v726
        %v736 = vor.u32 %v734, %v735
        %v737 = vshll.u32 2102212464, %v725
        %v738 = vshrl.u32 920167782, %v726
        %v739 = vor.u32 %v737, %v738
        %v740 = vshll.u32 920167782, %v725
        %v741 = vshrl.u32 1326507024, %v726
        %v742 = vor.u32 %v740, %v741
        %vm743 = vcmp.lt.s32.totalorder %v724, 1
        %vm744 = vcmp.lt.s32.totalorder %v724, 2
        %vm745 = vcmp.lt.s32.totalorder %v724, 3
        %vm746 = vcmp.lt.s32.totalorder %v724, 4
        %v747 = vsel %vm743, %v727, %v730
        %v748 = vsel %vm746, %v736, 2102212464
        %v749 = vsel %vm745, %v733, %v748
        %v750 = vsel %vm744, %v747, %v749
        %v751 = vsel %vm743, %v730, %v733
        %v752 = vsel %vm746, %v739, 920167782
        %v753 = vsel %vm745, %v736, %v752
        %v754 = vsel %vm744, %v751, %v753
        %v755 = vsel %vm743, %v733, %v736
        %v756 = vsel %vm746, %v742, 1326507024
        %v757 = vsel %vm745, %v739, %v756
        %v758 = vsel %vm744, %v755, %v757
        %v759 = vshll.u32 %v719, 8
        %v760 = vmul.u32.u64.compose %v759, %v758
        %v761 = vextract.low.u32 %v760
        %v762 = vextract.high.u32 %v760
        %v763 = vmul.u32.u64.compose %v759, %v754
        %v764 = vextract.low.u32 %v763
        %v765 = vextract.high.u32 %v763
        %v766 = vmul.u32 %v759, %v750
        %v767 = vadd.s32 %v762, %v764
        %vm768 = vc.u32 %v762, %v764
        %v769 = vadd.s32 %v765, 1
        %v770 = vsel %vm768, %v769, %v765
        %v771 = vadd.s32 %v766, %v770
        %v772 = vadd.s32 %v771, 536870912
        %v773 = vshrl.u32 %v772, 30
        %v774 = vshll.u32 %v773, 30
        %v775 = vsub.s32 %v771, %v774
        %vm776 = vcmp.lt.s32.totalorder %v775, 0
        %v777 = vsub.s32 0, %v775
        %v778 = vsel %vm776, %v777, %v775
        %v779 = vclz %v778
        %v780 = vsub.s32 %v779, 2
        %vm781 = vcmp.gt.s32.totalorder 0, %v780
        %v782 = vsel %vm781, 0, %v780
        %v783 = vsub.s32 32, %v782
        %v784 = vshll.u32 %v775, %v782
        %v785 = vshrl.u32 %v767, %v783
        %v786 = vor.u32 %v784, %v785
        %v787 = vsub.s32 4294967266, %v782
        %v788 = vadd.s32 %v787, 127
        %v789 = vshll.u32 %v788, 23
        %v790 = vor.u32 4788187, %v789
        %v791 = vand.u32 2147483647, %v790
        %v793 = vcvt.s32.f32 %v786
        %v794 = vmul.f32 %v793, %v791
        %v795 = vxor.u32 %v794, 2147483648
        %v796 = vsel %vm713, %v795, %v794
        %v797 = vsub.s32 4, %v773
        %v798 = vsel %vm713, %v797, %v773
        %v799 = vsel %vm712, %v291, %v796
        %v800 = vsel %vm712, 0, %v798
        %v801 = vcosq.f32.pop %v799
        %v802 = vsinq.f32.pop %v799
        %vm803 = vweird.f32 %v291
        %v804 = vadd.s32 %v800, 3
        %v805 = vand.u32 %v804, 3
        %vm806 = vcmp.lt.s32.totalorder %v805, 2
        %vm807 = vcmp.eq.s32.totalorder %v805, 0
        %v808 = vxor.u32 %v802, 2147483648
        %v809 = vsel %vm807, %v801, %v808
        %vm810 = vcmp.eq.s32.totalorder %v805, 2
        %v811 = vxor.u32 %v801, 2147483648
        %v812 = vsel %vm810, %v811, %v802
        %v813 = vsel %vm806, %v809, %v812
        %v814 = vsel %vm803, nan, %v813
        %v815 = vand.u32 2147483647, %v292
        %vm816 = vcmp.le.f32.partialorder %v815, 0.7853982
        %vm817 = vcmp.lt.s32.totalorder %v292, 0
        %v818 = vand.u32 %v292, 2139095040
        %v819 = vshrl.u32 %v818, 23
        %v820 = vsub.s32 %v819, 127
        %v821 = vand.u32 2147483647, %v292
        %v822 = vand.u32 %v821, 8388607
        %v823 = vor.u32 %v822, 8388608
        %v824 = vsub.s32 0, %v823
        %v825 = vadd.s32 %v820, 1
        %vm826 = vcmp.gt.s32.totalorder %v825, 0
        %v827 = vsel %vm826, %v825, 0
        %v828 = vshrl.u32 %v827, 5
        %v829 = vand.u32 %v827, 31
        %v830 = vsub.s32 32, %v829
        %v831 = vshrl.u32 683565275, %v830
        %v832 = vshll.u32 683565275, %v829
        %v833 = vshrl.u32 2475754826, %v830
        %v834 = vor.u32 %v832, %v833
        %v835 = vshll.u32 2475754826, %v829
        %v836 = vshrl.u32 2131351028, %v830
        %v837 = vor.u32 %v835, %v836
        %v838 = vshll.u32 2131351028, %v829
        %v839 = vshrl.u32 2102212464, %v830
        %v840 = vor.u32 %v838, %v839
        %v841 = vshll.u32 2102212464, %v829
        %v842 = vshrl.u32 920167782, %v830
        %v843 = vor.u32 %v841, %v842
        %v844 = vshll.u32 920167782, %v829
        %v845 = vshrl.u32 1326507024, %v830
        %v846 = vor.u32 %v844, %v845
        %vm847 = vcmp.lt.s32.totalorder %v828, 1
        %vm848 = vcmp.lt.s32.totalorder %v828, 2
        %vm849 = vcmp.lt.s32.totalorder %v828, 3
        %vm850 = vcmp.lt.s32.totalorder %v828, 4
        %v851 = vsel %vm847, %v831, %v834
        %v852 = vsel %vm850, %v840, 2102212464
        %v853 = vsel %vm849, %v837, %v852
        %v854 = vsel %vm848, %v851, %v853
        %v855 = vsel %vm847, %v834, %v837
        %v856 = vsel %vm850, %v843, 920167782
        %v857 = vsel %vm849, %v840, %v856
        %v858 = vsel %vm848, %v855, %v857
        %v859 = vsel %vm847, %v837, %v840
        %v860 = vsel %vm850, %v846, 1326507024
        %v861 = vsel %vm849, %v843, %v860
        %v862 = vsel %vm848, %v859, %v861
        %v863 = vshll.u32 %v823, 8
        %v864 = vmul.u32.u64.compose %v863, %v862
        %v865 = vextract.low.u32 %v864
        %v866 = vextract.high.u32 %v864
        %v867 = vmul.u32.u64.compose %v863, %v858
        %v868 = vextract.low.u32 %v867
        %v869 = vextract.high.u32 %v867
        %v870 = vmul.u32 %v863, %v854
        %v871 = vadd.s32 %v866, %v868
        %vm872 = vc.u32 %v866, %v868
        %v873 = vadd.s32 %v869, 1
        %v874 = vsel %vm872, %v873, %v869
        %v875 = vadd.s32 %v870, %v874
        %v876 = vadd.s32 %v875, 536870912
        %v877 = vshrl.u32 %v876, 30
        %v878 = vshll.u32 %v877, 30
        %v879 = vsub.s32 %v875, %v878
        %vm880 = vcmp.lt.s32.totalorder %v879, 0
        %v881 = vsub.s32 0, %v879
        %v882 = vsel %vm880, %v881, %v879
        %v883 = vclz %v882
        %v884 = vsub.s32 %v883, 2
        %vm885 = vcmp.gt.s32.totalorder 0, %v884
        %v886 = vsel %vm885, 0, %v884
        %v887 = vsub.s32 32, %v886
        %v888 = vshll.u32 %v879, %v886
        %v889 = vshrl.u32 %v871, %v887
        %v890 = vor.u32 %v888, %v889
        %v891 = vsub.s32 4294967266, %v886
        %v892 = vadd.s32 %v891, 127
        %v893 = vshll.u32 %v892, 23
        %v894 = vor.u32 4788187, %v893
        %v895 = vand.u32 2147483647, %v894
        %v897 = vcvt.s32.f32 %v890
        %v898 = vmul.f32 %v897, %v895
        %v899 = vxor.u32 %v898, 2147483648
        %v900 = vsel %vm817, %v899, %v898
        %v901 = vsub.s32 4, %v877
        %v902 = vsel %vm817, %v901, %v877
        %v903 = vsel %vm816, %v292, %v900
        %v904 = vsel %vm816, 0, %v902
        %v905 = vcosq.f32.pop %v903
        %v906 = vsinq.f32.pop %v903
        %vm907 = vweird.f32 %v292
        %v908 = vadd.s32 %v904, 3
        %v909 = vand.u32 %v908, 3
        %vm910 = vcmp.lt.s32.totalorder %v909, 2
        %vm911 = vcmp.eq.s32.totalorder %v909, 0
        %v912 = vxor.u32 %v906, 2147483648
        %v913 = vsel %vm911, %v905, %v912
        %vm914 = vcmp.eq.s32.totalorder %v909, 2
        %v915 = vxor.u32 %v905, 2147483648
        %v916 = vsel %vm914, %v915, %v906
        %v917 = vsel %vm910, %v913, %v916
        %v918 = vsel %vm907, nan, %v917
        %v919 = vand.u32 2147483647, %v293
        %vm920 = vcmp.le.f32.partialorder %v919, 0.7853982
        %vm921 = vcmp.lt.s32.totalorder %v293, 0
        %v922 = vand.u32 %v293, 2139095040
        %v923 = vshrl.u32 %v922, 23
        %v924 = vsub.s32 %v923, 127
        %v925 = vand.u32 2147483647, %v293
        %v926 = vand.u32 %v925, 8388607
        %v927 = vor.u32 %v926, 8388608
        %v928 = vsub.s32 0, %v927
        %v929 = vadd.s32 %v924, 1
        %vm930 = vcmp.gt.s32.totalorder %v929, 0
        %v931 = vsel %vm930, %v929, 0
        %v932 = vshrl.u32 %v931, 5
        %v933 = vand.u32 %v931, 31
        %v934 = vsub.s32 32, %v933
        %v935 = vshrl.u32 683565275, %v934
        %v936 = vshll.u32 683565275, %v933
        %v937 = vshrl.u32 2475754826, %v934
        %v938 = vor.u32 %v936, %v937
        %v939 = vshll.u32 2475754826, %v933
        %v940 = vshrl.u32 2131351028, %v934
        %v941 = vor.u32 %v939, %v940
        %v942 = vshll.u32 2131351028, %v933
        %v943 = vshrl.u32 2102212464, %v934
        %v944 = vor.u32 %v942, %v943
        %v945 = vshll.u32 2102212464, %v933
        %v946 = vshrl.u32 920167782, %v934
        %v947 = vor.u32 %v945, %v946
        %v948 = vshll.u32 920167782, %v933
        %v949 = vshrl.u32 1326507024, %v934
        %v950 = vor.u32 %v948, %v949
        %vm951 = vcmp.lt.s32.totalorder %v932, 1
        %vm952 = vcmp.lt.s32.totalorder %v932, 2
        %vm953 = vcmp.lt.s32.totalorder %v932, 3
        %vm954 = vcmp.lt.s32.totalorder %v932, 4
        %v955 = vsel %vm951, %v935, %v938
        %v956 = vsel %vm954, %v944, 2102212464
        %v957 = vsel %vm953, %v941, %v956
        %v958 = vsel %vm952, %v955, %v957
        %v959 = vsel %vm951, %v938, %v941
        %v960 = vsel %vm954, %v947, 920167782
        %v961 = vsel %vm953, %v944, %v960
        %v962 = vsel %vm952, %v959, %v961
        %v963 = vsel %vm951, %v941, %v944
        %v964 = vsel %vm954, %v950, 1326507024
        %v965 = vsel %vm953, %v947, %v964
        %v966 = vsel %vm952, %v963, %v965
        %v967 = vshll.u32 %v927, 8
        %v968 = vmul.u32.u64.compose %v967, %v966
        %v969 = vextract.low.u32 %v968
        %v970 = vextract.high.u32 %v968
        %v971 = vmul.u32.u64.compose %v967, %v962
        %v972 = vextract.low.u32 %v971
        %v973 = vextract.high.u32 %v971
        %v974 = vmul.u32 %v967, %v958
        %v975 = vadd.s32 %v970, %v972
        %vm976 = vc.u32 %v970, %v972
        %v977 = vadd.s32 %v973, 1
        %v978 = vsel %vm976, %v977, %v973
        %v979 = vadd.s32 %v974, %v978
        %v980 = vadd.s32 %v979, 536870912
        %v981 = vshrl.u32 %v980, 30
        %v982 = vshll.u32 %v981, 30
        %v983 = vsub.s32 %v979, %v982
        %vm984 = vcmp.lt.s32.totalorder %v983, 0
        %v985 = vsub.s32 0, %v983
        %v986 = vsel %vm984, %v985, %v983
        %v987 = vclz %v986
        %v988 = vsub.s32 %v987, 2
        %vm989 = vcmp.gt.s32.totalorder 0, %v988
        %v990 = vsel %vm989, 0, %v988
        %v991 = vsub.s32 32, %v990
        %v992 = vshll.u32 %v983, %v990
        %v993 = vshrl.u32 %v975, %v991
        %v994 = vor.u32 %v992, %v993
        %v995 = vsub.s32 4294967266, %v990
        %v996 = vadd.s32 %v995, 127
        %v997 = vshll.u32 %v996, 23
        %v998 = vor.u32 4788187, %v997
        %v999 = vand.u32 2147483647, %v998
        %v1001 = vcvt.s32.f32 %v994
        %v1002 = vmul.f32 %v1001, %v999
        %v1003 = vxor.u32 %v1002, 2147483648
        %v1004 = vsel %vm921, %v1003, %v1002
        %v1005 = vsub.s32 4, %v981
        %v1006 = vsel %vm921, %v1005, %v981
        %v1007 = vsel %vm920, %v293, %v1004
        %v1008 = vsel %vm920, 0, %v1006
        %v1009 = vcosq.f32.pop %v1007
        %v1010 = vsinq.f32.pop %v1007
        %vm1011 = vweird.f32 %v293
        %v1012 = vadd.s32 %v1008, 3
        %v1013 = vand.u32 %v1012, 3
        %vm1014 = vcmp.lt.s32.totalorder %v1013, 2
        %vm1015 = vcmp.eq.s32.totalorder %v1013, 0
        %v1016 = vxor.u32 %v1010, 2147483648
        %v1017 = vsel %vm1015, %v1009, %v1016
        %vm1018 = vcmp.eq.s32.totalorder %v1013, 2
        %v1019 = vxor.u32 %v1009, 2147483648
        %v1020 = vsel %vm1018, %v1019, %v1010
        %v1021 = vsel %vm1014, %v1017, %v1020
        %v1022 = vsel %vm1011, nan, %v1021
        %v1023 = vand.u32 2147483647, %v294
        %vm1024 = vcmp.le.f32.partialorder %v1023, 0.7853982
        %vm1025 = vcmp.lt.s32.totalorder %v294, 0
        %v1026 = vand.u32 %v294, 2139095040
        %v1027 = vshrl.u32 %v1026, 23
        %v1028 = vsub.s32 %v1027, 127
        %v1029 = vand.u32 2147483647, %v294
        %v1030 = vand.u32 %v1029, 8388607
        %v1031 = vor.u32 %v1030, 8388608
        %v1032 = vsub.s32 0, %v1031
        %v1033 = vadd.s32 %v1028, 1
        %vm1034 = vcmp.gt.s32.totalorder %v1033, 0
        %v1035 = vsel %vm1034, %v1033, 0
        %v1036 = vshrl.u32 %v1035, 5
        %v1037 = vand.u32 %v1035, 31
        %v1038 = vsub.s32 32, %v1037
        %v1039 = vshrl.u32 683565275, %v1038
        %v1040 = vshll.u32 683565275, %v1037
        %v1041 = vshrl.u32 2475754826, %v1038
        %v1042 = vor.u32 %v1040, %v1041
        %v1043 = vshll.u32 2475754826, %v1037
        %v1044 = vshrl.u32 2131351028, %v1038
        %v1045 = vor.u32 %v1043, %v1044
        %v1046 = vshll.u32 2131351028, %v1037
        %v1047 = vshrl.u32 2102212464, %v1038
        %v1048 = vor.u32 %v1046, %v1047
        %v1049 = vshll.u32 2102212464, %v1037
        %v1050 = vshrl.u32 920167782, %v1038
        %v1051 = vor.u32 %v1049, %v1050
        %v1052 = vshll.u32 920167782, %v1037
        %v1053 = vshrl.u32 1326507024, %v1038
        %v1054 = vor.u32 %v1052, %v1053
        %vm1055 = vcmp.lt.s32.totalorder %v1036, 1
        %vm1056 = vcmp.lt.s32.totalorder %v1036, 2
        %vm1057 = vcmp.lt.s32.totalorder %v1036, 3
        %vm1058 = vcmp.lt.s32.totalorder %v1036, 4
        %v1059 = vsel %vm1055, %v1039, %v1042
        %v1060 = vsel %vm1058, %v1048, 2102212464
        %v1061 = vsel %vm1057, %v1045, %v1060
        %v1062 = vsel %vm1056, %v1059, %v1061
        %v1063 = vsel %vm1055, %v1042, %v1045
        %v1064 = vsel %vm1058, %v1051, 920167782
        %v1065 = vsel %vm1057, %v1048, %v1064
        %v1066 = vsel %vm1056, %v1063, %v1065
        %v1067 = vsel %vm1055, %v1045, %v1048
        %v1068 = vsel %vm1058, %v1054, 1326507024
        %v1069 = vsel %vm1057, %v1051, %v1068
        %v1070 = vsel %vm1056, %v1067, %v1069
        %v1071 = vshll.u32 %v1031, 8
        %v1072 = vmul.u32.u64.compose %v1071, %v1070
        %v1073 = vextract.low.u32 %v1072
        %v1074 = vextract.high.u32 %v1072
        %v1075 = vmul.u32.u64.compose %v1071, %v1066
        %v1076 = vextract.low.u32 %v1075
        %v1077 = vextract.high.u32 %v1075
        %v1078 = vmul.u32 %v1071, %v1062
        %v1079 = vadd.s32 %v1074, %v1076
        %vm1080 = vc.u32 %v1074, %v1076
        %v1081 = vadd.s32 %v1077, 1
        %v1082 = vsel %vm1080, %v1081, %v1077
        %v1083 = vadd.s32 %v1078, %v1082
        %v1084 = vadd.s32 %v1083, 536870912
        %v1085 = vshrl.u32 %v1084, 30
        %v1086 = vshll.u32 %v1085, 30
        %v1087 = vsub.s32 %v1083, %v1086
        %vm1088 = vcmp.lt.s32.totalorder %v1087, 0
        %v1089 = vsub.s32 0, %v1087
        %v1090 = vsel %vm1088, %v1089, %v1087
        %v1091 = vclz %v1090
        %v1092 = vsub.s32 %v1091, 2
        %vm1093 = vcmp.gt.s32.totalorder 0, %v1092
        %v1094 = vsel %vm1093, 0, %v1092
        %v1095 = vsub.s32 32, %v1094
        %v1096 = vshll.u32 %v1087, %v1094
        %v1097 = vshrl.u32 %v1079, %v1095
        %v1098 = vor.u32 %v1096, %v1097
        %v1099 = vsub.s32 4294967266, %v1094
        %v1100 = vadd.s32 %v1099, 127
        %v1101 = vshll.u32 %v1100, 23
        %v1102 = vor.u32 4788187, %v1101
        %v1103 = vand.u32 2147483647, %v1102
        %v1105 = vcvt.s32.f32 %v1098
        %v1106 = vmul.f32 %v1105, %v1103
        %v1107 = vxor.u32 %v1106, 2147483648
        %v1108 = vsel %vm1025, %v1107, %v1106
        %v1109 = vsub.s32 4, %v1085
        %v1110 = vsel %vm1025, %v1109, %v1085
        %v1111 = vsel %vm1024, %v294, %v1108
        %v1112 = vsel %vm1024, 0, %v1110
        %v1113 = vcosq.f32.pop %v1111
        %v1114 = vsinq.f32.pop %v1111
        %vm1115 = vweird.f32 %v294
        %v1116 = vadd.s32 %v1112, 3
        %v1117 = vand.u32 %v1116, 3
        %vm1118 = vcmp.lt.s32.totalorder %v1117, 2
        %vm1119 = vcmp.eq.s32.totalorder %v1117, 0
        %v1120 = vxor.u32 %v1114, 2147483648
        %v1121 = vsel %vm1119, %v1113, %v1120
        %vm1122 = vcmp.eq.s32.totalorder %v1117, 2
        %v1123 = vxor.u32 %v1113, 2147483648
        %v1124 = vsel %vm1122, %v1123, %v1114
        %v1125 = vsel %vm1118, %v1121, %v1124
        %v1126 = vsel %vm1115, nan, %v1125
        %1127 = vst [vmem:[%s161] sm:$0xff] %v398
        %1128 = vst [vmem:[%s161 + $0x8] sm:$0xff] %v502
        %1129 = vst [vmem:[%s161 + $0x10] sm:$0xff] %v606
        %1130 = vst [vmem:[%s161 + $0x18] sm:$0xff] %v710
        %1131 = vst [vmem:[%s161 + $0x20] sm:$0xff] %v814
        %1132 = vst [vmem:[%s161 + $0x28] sm:$0xff] %v918
        %1133 = vst [vmem:[%s161 + $0x30] sm:$0xff] %v1022
        %1134 = vst [vmem:[%s161 + $0x38] sm:$0xff] %v1126
        %v1135 = vand.u32 2147483647, %v287
        %vm1136 = vcmp.le.f32.partialorder %v1135, 0.7853982
        %vm1137 = vcmp.lt.s32.totalorder %v287, 0
        %v1138 = vand.u32 %v287, 2139095040
        %v1139 = vshrl.u32 %v1138, 23
        %v1140 = vsub.s32 %v1139, 127
        %v1141 = vand.u32 2147483647, %v287
        %v1142 = vand.u32 %v1141, 8388607
        %v1143 = vor.u32 %v1142, 8388608
        %v1144 = vsub.s32 0, %v1143
        %v1145 = vadd.s32 %v1140, 1
        %vm1146 = vcmp.gt.s32.totalorder %v1145, 0
        %v1147 = vsel %vm1146, %v1145, 0
        %v1148 = vshrl.u32 %v1147, 5
        %v1149 = vand.u32 %v1147, 31
        %v1150 = vsub.s32 32, %v1149
        %v1151 = vshrl.u32 683565275, %v1150
        %v1152 = vshll.u32 683565275, %v1149
        %v1153 = vshrl.u32 2475754826, %v1150
        %v1154 = vor.u32 %v1152, %v1153
        %v1155 = vshll.u32 2475754826, %v1149
        %v1156 = vshrl.u32 2131351028, %v1150
        %v1157 = vor.u32 %v1155, %v1156
        %v1158 = vshll.u32 2131351028, %v1149
        %v1159 = vshrl.u32 2102212464, %v1150
        %v1160 = vor.u32 %v1158, %v1159
        %v1161 = vshll.u32 2102212464, %v1149
        %v1162 = vshrl.u32 920167782, %v1150
        %v1163 = vor.u32 %v1161, %v1162
        %v1164 = vshll.u32 920167782, %v1149
        %v1165 = vshrl.u32 1326507024, %v1150
        %v1166 = vor.u32 %v1164, %v1165
        %vm1167 = vcmp.lt.s32.totalorder %v1148, 1
        %vm1168 = vcmp.lt.s32.totalorder %v1148, 2
        %vm1169 = vcmp.lt.s32.totalorder %v1148, 3
        %vm1170 = vcmp.lt.s32.totalorder %v1148, 4
        %v1171 = vsel %vm1167, %v1151, %v1154
        %v1172 = vsel %vm1170, %v1160, 2102212464
        %v1173 = vsel %vm1169, %v1157, %v1172
        %v1174 = vsel %vm1168, %v1171, %v1173
        %v1175 = vsel %vm1167, %v1154, %v1157
        %v1176 = vsel %vm1170, %v1163, 920167782
        %v1177 = vsel %vm1169, %v1160, %v1176
        %v1178 = vsel %vm1168, %v1175, %v1177
        %v1179 = vsel %vm1167, %v1157, %v1160
        %v1180 = vsel %vm1170, %v1166, 1326507024
        %v1181 = vsel %vm1169, %v1163, %v1180
        %v1182 = vsel %vm1168, %v1179, %v1181
        %v1183 = vshll.u32 %v1143, 8
        %v1184 = vmul.u32.u64.compose %v1183, %v1182
        %v1185 = vextract.low.u32 %v1184
        %v1186 = vextract.high.u32 %v1184
        %v1187 = vmul.u32.u64.compose %v1183, %v1178
        %v1188 = vextract.low.u32 %v1187
        %v1189 = vextract.high.u32 %v1187
        %v1190 = vmul.u32 %v1183, %v1174
        %v1191 = vadd.s32 %v1186, %v1188
        %vm1192 = vc.u32 %v1186, %v1188
        %v1193 = vadd.s32 %v1189, 1
        %v1194 = vsel %vm1192, %v1193, %v1189
        %v1195 = vadd.s32 %v1190, %v1194
        %v1196 = vadd.s32 %v1195, 536870912
        %v1197 = vshrl.u32 %v1196, 30
        %v1198 = vshll.u32 %v1197, 30
        %v1199 = vsub.s32 %v1195, %v1198
        %vm1200 = vcmp.lt.s32.totalorder %v1199, 0
        %v1201 = vsub.s32 0, %v1199
        %v1202 = vsel %vm1200, %v1201, %v1199
        %v1203 = vclz %v1202
        %v1204 = vsub.s32 %v1203, 2
        %vm1205 = vcmp.gt.s32.totalorder 0, %v1204
        %v1206 = vsel %vm1205, 0, %v1204
        %v1207 = vsub.s32 32, %v1206
        %v1208 = vshll.u32 %v1199, %v1206
        %v1209 = vshrl.u32 %v1191, %v1207
        %v1210 = vor.u32 %v1208, %v1209
        %v1211 = vsub.s32 4294967266, %v1206
        %v1212 = vadd.s32 %v1211, 127
        %v1213 = vshll.u32 %v1212, 23
        %v1214 = vor.u32 4788187, %v1213
        %v1215 = vand.u32 2147483647, %v1214
        %v1217 = vcvt.s32.f32 %v1210
        %v1218 = vmul.f32 %v1217, %v1215
        %v1219 = vxor.u32 %v1218, 2147483648
        %v1220 = vsel %vm1137, %v1219, %v1218
        %v1221 = vsub.s32 4, %v1197
        %v1222 = vsel %vm1137, %v1221, %v1197
        %v1223 = vsel %vm1136, %v287, %v1220
        %v1224 = vsel %vm1136, 0, %v1222
        %v1225 = vcosq.f32.pop %v1223
        %v1226 = vsinq.f32.pop %v1223
        %vm1227 = vweird.f32 %v287
        %v1228 = vand.u32 %v1224, 3
        %vm1229 = vcmp.lt.s32.totalorder %v1228, 2
        %vm1230 = vcmp.eq.s32.totalorder %v1228, 0
        %v1231 = vxor.u32 %v1226, 2147483648
        %v1232 = vsel %vm1230, %v1225, %v1231
        %vm1233 = vcmp.eq.s32.totalorder %v1228, 2
        %v1234 = vxor.u32 %v1225, 2147483648
        %v1235 = vsel %vm1233, %v1234, %v1226
        %v1236 = vsel %vm1229, %v1232, %v1235
        %v1237 = vsel %vm1227, nan, %v1236
        %v1238 = vand.u32 2147483647, %v288
        %vm1239 = vcmp.le.f32.partialorder %v1238, 0.7853982
        %vm1240 = vcmp.lt.s32.totalorder %v288, 0
        %v1241 = vand.u32 %v288, 2139095040
        %v1242 = vshrl.u32 %v1241, 23
        %v1243 = vsub.s32 %v1242, 127
        %v1244 = vand.u32 2147483647, %v288
        %v1245 = vand.u32 %v1244, 8388607
        %v1246 = vor.u32 %v1245, 8388608
        %v1247 = vsub.s32 0, %v1246
        %v1248 = vadd.s32 %v1243, 1
        %vm1249 = vcmp.gt.s32.totalorder %v1248, 0
        %v1250 = vsel %vm1249, %v1248, 0
        %v1251 = vshrl.u32 %v1250, 5
        %v1252 = vand.u32 %v1250, 31
        %v1253 = vsub.s32 32, %v1252
        %v1254 = vshrl.u32 683565275, %v1253
        %v1255 = vshll.u32 683565275, %v1252
        %v1256 = vshrl.u32 2475754826, %v1253
        %v1257 = vor.u32 %v1255, %v1256
        %v1258 = vshll.u32 2475754826, %v1252
        %v1259 = vshrl.u32 2131351028, %v1253
        %v1260 = vor.u32 %v1258, %v1259
        %v1261 = vshll.u32 2131351028, %v1252
        %v1262 = vshrl.u32 2102212464, %v1253
        %v1263 = vor.u32 %v1261, %v1262
        %v1264 = vshll.u32 2102212464, %v1252
        %v1265 = vshrl.u32 920167782, %v1253
        %v1266 = vor.u32 %v1264, %v1265
        %v1267 = vshll.u32 920167782, %v1252
        %v1268 = vshrl.u32 1326507024, %v1253
        %v1269 = vor.u32 %v1267, %v1268
        %vm1270 = vcmp.lt.s32.totalorder %v1251, 1
        %vm1271 = vcmp.lt.s32.totalorder %v1251, 2
        %vm1272 = vcmp.lt.s32.totalorder %v1251, 3
        %vm1273 = vcmp.lt.s32.totalorder %v1251, 4
        %v1274 = vsel %vm1270, %v1254, %v1257
        %v1275 = vsel %vm1273, %v1263, 2102212464
        %v1276 = vsel %vm1272, %v1260, %v1275
        %v1277 = vsel %vm1271, %v1274, %v1276
        %v1278 = vsel %vm1270, %v1257, %v1260
        %v1279 = vsel %vm1273, %v1266, 920167782
        %v1280 = vsel %vm1272, %v1263, %v1279
        %v1281 = vsel %vm1271, %v1278, %v1280
        %v1282 = vsel %vm1270, %v1260, %v1263
        %v1283 = vsel %vm1273, %v1269, 1326507024
        %v1284 = vsel %vm1272, %v1266, %v1283
        %v1285 = vsel %vm1271, %v1282, %v1284
        %v1286 = vshll.u32 %v1246, 8
        %v1287 = vmul.u32.u64.compose %v1286, %v1285
        %v1288 = vextract.low.u32 %v1287
        %v1289 = vextract.high.u32 %v1287
        %v1290 = vmul.u32.u64.compose %v1286, %v1281
        %v1291 = vextract.low.u32 %v1290
        %v1292 = vextract.high.u32 %v1290
        %v1293 = vmul.u32 %v1286, %v1277
        %v1294 = vadd.s32 %v1289, %v1291
        %vm1295 = vc.u32 %v1289, %v1291
        %v1296 = vadd.s32 %v1292, 1
        %v1297 = vsel %vm1295, %v1296, %v1292
        %v1298 = vadd.s32 %v1293, %v1297
        %v1299 = vadd.s32 %v1298, 536870912
        %v1300 = vshrl.u32 %v1299, 30
        %v1301 = vshll.u32 %v1300, 30
        %v1302 = vsub.s32 %v1298, %v1301
        %vm1303 = vcmp.lt.s32.totalorder %v1302, 0
        %v1304 = vsub.s32 0, %v1302
        %v1305 = vsel %vm1303, %v1304, %v1302
        %v1306 = vclz %v1305
        %v1307 = vsub.s32 %v1306, 2
        %vm1308 = vcmp.gt.s32.totalorder 0, %v1307
        %v1309 = vsel %vm1308, 0, %v1307
        %v1310 = vsub.s32 32, %v1309
        %v1311 = vshll.u32 %v1302, %v1309
        %v1312 = vshrl.u32 %v1294, %v1310
        %v1313 = vor.u32 %v1311, %v1312
        %v1314 = vsub.s32 4294967266, %v1309
        %v1315 = vadd.s32 %v1314, 127
        %v1316 = vshll.u32 %v1315, 23
        %v1317 = vor.u32 4788187, %v1316
        %v1318 = vand.u32 2147483647, %v1317
        %v1320 = vcvt.s32.f32 %v1313
        %v1321 = vmul.f32 %v1320, %v1318
        %v1322 = vxor.u32 %v1321, 2147483648
        %v1323 = vsel %vm1240, %v1322, %v1321
        %v1324 = vsub.s32 4, %v1300
        %v1325 = vsel %vm1240, %v1324, %v1300
        %v1326 = vsel %vm1239, %v288, %v1323
        %v1327 = vsel %vm1239, 0, %v1325
        %v1328 = vcosq.f32.pop %v1326
        %v1329 = vsinq.f32.pop %v1326
        %vm1330 = vweird.f32 %v288
        %v1331 = vand.u32 %v1327, 3
        %vm1332 = vcmp.lt.s32.totalorder %v1331, 2
        %vm1333 = vcmp.eq.s32.totalorder %v1331, 0
        %v1334 = vxor.u32 %v1329, 2147483648
        %v1335 = vsel %vm1333, %v1328, %v1334
        %vm1336 = vcmp.eq.s32.totalorder %v1331, 2
        %v1337 = vxor.u32 %v1328, 2147483648
        %v1338 = vsel %vm1336, %v1337, %v1329
        %v1339 = vsel %vm1332, %v1335, %v1338
        %v1340 = vsel %vm1330, nan, %v1339
        %v1341 = vand.u32 2147483647, %v289
        %vm1342 = vcmp.le.f32.partialorder %v1341, 0.7853982
        %vm1343 = vcmp.lt.s32.totalorder %v289, 0
        %v1344 = vand.u32 %v289, 2139095040
        %v1345 = vshrl.u32 %v1344, 23
        %v1346 = vsub.s32 %v1345, 127
        %v1347 = vand.u32 2147483647, %v289
        %v1348 = vand.u32 %v1347, 8388607
        %v1349 = vor.u32 %v1348, 8388608
        %v1350 = vsub.s32 0, %v1349
        %v1351 = vadd.s32 %v1346, 1
        %vm1352 = vcmp.gt.s32.totalorder %v1351, 0
        %v1353 = vsel %vm1352, %v1351, 0
        %v1354 = vshrl.u32 %v1353, 5
        %v1355 = vand.u32 %v1353, 31
        %v1356 = vsub.s32 32, %v1355
        %v1357 = vshrl.u32 683565275, %v1356
        %v1358 = vshll.u32 683565275, %v1355
        %v1359 = vshrl.u32 2475754826, %v1356
        %v1360 = vor.u32 %v1358, %v1359
        %v1361 = vshll.u32 2475754826, %v1355
        %v1362 = vshrl.u32 2131351028, %v1356
        %v1363 = vor.u32 %v1361, %v1362
        %v1364 = vshll.u32 2131351028, %v1355
        %v1365 = vshrl.u32 2102212464, %v1356
        %v1366 = vor.u32 %v1364, %v1365
        %v1367 = vshll.u32 2102212464, %v1355
        %v1368 = vshrl.u32 920167782, %v1356
        %v1369 = vor.u32 %v1367, %v1368
        %v1370 = vshll.u32 920167782, %v1355
        %v1371 = vshrl.u32 1326507024, %v1356
        %v1372 = vor.u32 %v1370, %v1371
        %vm1373 = vcmp.lt.s32.totalorder %v1354, 1
        %vm1374 = vcmp.lt.s32.totalorder %v1354, 2
        %vm1375 = vcmp.lt.s32.totalorder %v1354, 3
        %vm1376 = vcmp.lt.s32.totalorder %v1354, 4
        %v1377 = vsel %vm1373, %v1357, %v1360
        %v1378 = vsel %vm1376, %v1366, 2102212464
        %v1379 = vsel %vm1375, %v1363, %v1378
        %v1380 = vsel %vm1374, %v1377, %v1379
        %v1381 = vsel %vm1373, %v1360, %v1363
        %v1382 = vsel %vm1376, %v1369, 920167782
        %v1383 = vsel %vm1375, %v1366, %v1382
        %v1384 = vsel %vm1374, %v1381, %v1383
        %v1385 = vsel %vm1373, %v1363, %v1366
        %v1386 = vsel %vm1376, %v1372, 1326507024
        %v1387 = vsel %vm1375, %v1369, %v1386
        %v1388 = vsel %vm1374, %v1385, %v1387
        %v1389 = vshll.u32 %v1349, 8
        %v1390 = vmul.u32.u64.compose %v1389, %v1388
        %v1391 = vextract.low.u32 %v1390
        %v1392 = vextract.high.u32 %v1390
        %v1393 = vmul.u32.u64.compose %v1389, %v1384
        %v1394 = vextract.low.u32 %v1393
        %v1395 = vextract.high.u32 %v1393
        %v1396 = vmul.u32 %v1389, %v1380
        %v1397 = vadd.s32 %v1392, %v1394
        %vm1398 = vc.u32 %v1392, %v1394
        %v1399 = vadd.s32 %v1395, 1
        %v1400 = vsel %vm1398, %v1399, %v1395
        %v1401 = vadd.s32 %v1396, %v1400
        %v1402 = vadd.s32 %v1401, 536870912
        %v1403 = vshrl.u32 %v1402, 30
        %v1404 = vshll.u32 %v1403, 30
        %v1405 = vsub.s32 %v1401, %v1404
        %vm1406 = vcmp.lt.s32.totalorder %v1405, 0
        %v1407 = vsub.s32 0, %v1405
        %v1408 = vsel %vm1406, %v1407, %v1405
        %v1409 = vclz %v1408
        %v1410 = vsub.s32 %v1409, 2
        %vm1411 = vcmp.gt.s32.totalorder 0, %v1410
        %v1412 = vsel %vm1411, 0, %v1410
        %v1413 = vsub.s32 32, %v1412
        %v1414 = vshll.u32 %v1405, %v1412
        %v1415 = vshrl.u32 %v1397, %v1413
        %v1416 = vor.u32 %v1414, %v1415
        %v1417 = vsub.s32 4294967266, %v1412
        %v1418 = vadd.s32 %v1417, 127
        %v1419 = vshll.u32 %v1418, 23
        %v1420 = vor.u32 4788187, %v1419
        %v1421 = vand.u32 2147483647, %v1420
        %v1423 = vcvt.s32.f32 %v1416
        %v1424 = vmul.f32 %v1423, %v1421
        %v1425 = vxor.u32 %v1424, 2147483648
        %v1426 = vsel %vm1343, %v1425, %v1424
        %v1427 = vsub.s32 4, %v1403
        %v1428 = vsel %vm1343, %v1427, %v1403
        %v1429 = vsel %vm1342, %v289, %v1426
        %v1430 = vsel %vm1342, 0, %v1428
        %v1431 = vcosq.f32.pop %v1429
        %v1432 = vsinq.f32.pop %v1429
        %vm1433 = vweird.f32 %v289
        %v1434 = vand.u32 %v1430, 3
        %vm1435 = vcmp.lt.s32.totalorder %v1434, 2
        %vm1436 = vcmp.eq.s32.totalorder %v1434, 0
        %v1437 = vxor.u32 %v1432, 2147483648
        %v1438 = vsel %vm1436, %v1431, %v1437
        %vm1439 = vcmp.eq.s32.totalorder %v1434, 2
        %v1440 = vxor.u32 %v1431, 2147483648
        %v1441 = vsel %vm1439, %v1440, %v1432
        %v1442 = vsel %vm1435, %v1438, %v1441
        %v1443 = vsel %vm1433, nan, %v1442
        %v1444 = vand.u32 2147483647, %v290
        %vm1445 = vcmp.le.f32.partialorder %v1444, 0.7853982
        %vm1446 = vcmp.lt.s32.totalorder %v290, 0
        %v1447 = vand.u32 %v290, 2139095040
        %v1448 = vshrl.u32 %v1447, 23
        %v1449 = vsub.s32 %v1448, 127
        %v1450 = vand.u32 2147483647, %v290
        %v1451 = vand.u32 %v1450, 8388607
        %v1452 = vor.u32 %v1451, 8388608
        %v1453 = vsub.s32 0, %v1452
        %v1454 = vadd.s32 %v1449, 1
        %vm1455 = vcmp.gt.s32.totalorder %v1454, 0
        %v1456 = vsel %vm1455, %v1454, 0
        %v1457 = vshrl.u32 %v1456, 5
        %v1458 = vand.u32 %v1456, 31
        %v1459 = vsub.s32 32, %v1458
        %v1460 = vshrl.u32 683565275, %v1459
        %v1461 = vshll.u32 683565275, %v1458
        %v1462 = vshrl.u32 2475754826, %v1459
        %v1463 = vor.u32 %v1461, %v1462
        %v1464 = vshll.u32 2475754826, %v1458
        %v1465 = vshrl.u32 2131351028, %v1459
        %v1466 = vor.u32 %v1464, %v1465
        %v1467 = vshll.u32 2131351028, %v1458
        %v1468 = vshrl.u32 2102212464, %v1459
        %v1469 = vor.u32 %v1467, %v1468
        %v1470 = vshll.u32 2102212464, %v1458
        %v1471 = vshrl.u32 920167782, %v1459
        %v1472 = vor.u32 %v1470, %v1471
        %v1473 = vshll.u32 920167782, %v1458
        %v1474 = vshrl.u32 1326507024, %v1459
        %v1475 = vor.u32 %v1473, %v1474
        %vm1476 = vcmp.lt.s32.totalorder %v1457, 1
        %vm1477 = vcmp.lt.s32.totalorder %v1457, 2
        %vm1478 = vcmp.lt.s32.totalorder %v1457, 3
        %vm1479 = vcmp.lt.s32.totalorder %v1457, 4
        %v1480 = vsel %vm1476, %v1460, %v1463
        %v1481 = vsel %vm1479, %v1469, 2102212464
        %v1482 = vsel %vm1478, %v1466, %v1481
        %v1483 = vsel %vm1477, %v1480, %v1482
        %v1484 = vsel %vm1476, %v1463, %v1466
        %v1485 = vsel %vm1479, %v1472, 920167782
        %v1486 = vsel %vm1478, %v1469, %v1485
        %v1487 = vsel %vm1477, %v1484, %v1486
        %v1488 = vsel %vm1476, %v1466, %v1469
        %v1489 = vsel %vm1479, %v1475, 1326507024
        %v1490 = vsel %vm1478, %v1472, %v1489
        %v1491 = vsel %vm1477, %v1488, %v1490
        %v1492 = vshll.u32 %v1452, 8
        %v1493 = vmul.u32.u64.compose %v1492, %v1491
        %v1494 = vextract.low.u32 %v1493
        %v1495 = vextract.high.u32 %v1493
        %v1496 = vmul.u32.u64.compose %v1492, %v1487
        %v1497 = vextract.low.u32 %v1496
        %v1498 = vextract.high.u32 %v1496
        %v1499 = vmul.u32 %v1492, %v1483
        %v1500 = vadd.s32 %v1495, %v1497
        %vm1501 = vc.u32 %v1495, %v1497
        %v1502 = vadd.s32 %v1498, 1
        %v1503 = vsel %vm1501, %v1502, %v1498
        %v1504 = vadd.s32 %v1499, %v1503
        %v1505 = vadd.s32 %v1504, 536870912
        %v1506 = vshrl.u32 %v1505, 30
        %v1507 = vshll.u32 %v1506, 30
        %v1508 = vsub.s32 %v1504, %v1507
        %vm1509 = vcmp.lt.s32.totalorder %v1508, 0
        %v1510 = vsub.s32 0, %v1508
        %v1511 = vsel %vm1509, %v1510, %v1508
        %v1512 = vclz %v1511
        %v1513 = vsub.s32 %v1512, 2
        %vm1514 = vcmp.gt.s32.totalorder 0, %v1513
        %v1515 = vsel %vm1514, 0, %v1513
        %v1516 = vsub.s32 32, %v1515
        %v1517 = vshll.u32 %v1508, %v1515
        %v1518 = vshrl.u32 %v1500, %v1516
        %v1519 = vor.u32 %v1517, %v1518
        %v1520 = vsub.s32 4294967266, %v1515
        %v1521 = vadd.s32 %v1520, 127
        %v1522 = vshll.u32 %v1521, 23
        %v1523 = vor.u32 4788187, %v1522
        %v1524 = vand.u32 2147483647, %v1523
        %v1526 = vcvt.s32.f32 %v1519
        %v1527 = vmul.f32 %v1526, %v1524
        %v1528 = vxor.u32 %v1527, 2147483648
        %v1529 = vsel %vm1446, %v1528, %v1527
        %v1530 = vsub.s32 4, %v1506
        %v1531 = vsel %vm1446, %v1530, %v1506
        %v1532 = vsel %vm1445, %v290, %v1529
        %v1533 = vsel %vm1445, 0, %v1531
        %v1534 = vcosq.f32.pop %v1532
        %v1535 = vsinq.f32.pop %v1532
        %vm1536 = vweird.f32 %v290
        %v1537 = vand.u32 %v1533, 3
        %vm1538 = vcmp.lt.s32.totalorder %v1537, 2
        %vm1539 = vcmp.eq.s32.totalorder %v1537, 0
        %v1540 = vxor.u32 %v1535, 2147483648
        %v1541 = vsel %vm1539, %v1534, %v1540
        %vm1542 = vcmp.eq.s32.totalorder %v1537, 2
        %v1543 = vxor.u32 %v1534, 2147483648
        %v1544 = vsel %vm1542, %v1543, %v1535
        %v1545 = vsel %vm1538, %v1541, %v1544
        %v1546 = vsel %vm1536, nan, %v1545
        %v1547 = vand.u32 2147483647, %v291
        %vm1548 = vcmp.le.f32.partialorder %v1547, 0.7853982
        %vm1549 = vcmp.lt.s32.totalorder %v291, 0
        %v1550 = vand.u32 %v291, 2139095040
        %v1551 = vshrl.u32 %v1550, 23
        %v1552 = vsub.s32 %v1551, 127
        %v1553 = vand.u32 2147483647, %v291
        %v1554 = vand.u32 %v1553, 8388607
        %v1555 = vor.u32 %v1554, 8388608
        %v1556 = vsub.s32 0, %v1555
        %v1557 = vadd.s32 %v1552, 1
        %vm1558 = vcmp.gt.s32.totalorder %v1557, 0
        %v1559 = vsel %vm1558, %v1557, 0
        %v1560 = vshrl.u32 %v1559, 5
        %v1561 = vand.u32 %v1559, 31
        %v1562 = vsub.s32 32, %v1561
        %v1563 = vshrl.u32 683565275, %v1562
        %v1564 = vshll.u32 683565275, %v1561
        %v1565 = vshrl.u32 2475754826, %v1562
        %v1566 = vor.u32 %v1564, %v1565
        %v1567 = vshll.u32 2475754826, %v1561
        %v1568 = vshrl.u32 2131351028, %v1562
        %v1569 = vor.u32 %v1567, %v1568
        %v1570 = vshll.u32 2131351028, %v1561
        %v1571 = vshrl.u32 2102212464, %v1562
        %v1572 = vor.u32 %v1570, %v1571
        %v1573 = vshll.u32 2102212464, %v1561
        %v1574 = vshrl.u32 920167782, %v1562
        %v1575 = vor.u32 %v1573, %v1574
        %v1576 = vshll.u32 920167782, %v1561
        %v1577 = vshrl.u32 1326507024, %v1562
        %v1578 = vor.u32 %v1576, %v1577
        %vm1579 = vcmp.lt.s32.totalorder %v1560, 1
        %vm1580 = vcmp.lt.s32.totalorder %v1560, 2
        %vm1581 = vcmp.lt.s32.totalorder %v1560, 3
        %vm1582 = vcmp.lt.s32.totalorder %v1560, 4
        %v1583 = vsel %vm1579, %v1563, %v1566
        %v1584 = vsel %vm1582, %v1572, 2102212464
        %v1585 = vsel %vm1581, %v1569, %v1584
        %v1586 = vsel %vm1580, %v1583, %v1585
        %v1587 = vsel %vm1579, %v1566, %v1569
        %v1588 = vsel %vm1582, %v1575, 920167782
        %v1589 = vsel %vm1581, %v1572, %v1588
        %v1590 = vsel %vm1580, %v1587, %v1589
        %v1591 = vsel %vm1579, %v1569, %v1572
        %v1592 = vsel %vm1582, %v1578, 1326507024
        %v1593 = vsel %vm1581, %v1575, %v1592
        %v1594 = vsel %vm1580, %v1591, %v1593
        %v1595 = vshll.u32 %v1555, 8
        %v1596 = vmul.u32.u64.compose %v1595, %v1594
        %v1597 = vextract.low.u32 %v1596
        %v1598 = vextract.high.u32 %v1596
        %v1599 = vmul.u32.u64.compose %v1595, %v1590
        %v1600 = vextract.low.u32 %v1599
        %v1601 = vextract.high.u32 %v1599
        %v1602 = vmul.u32 %v1595, %v1586
        %v1603 = vadd.s32 %v1598, %v1600
        %vm1604 = vc.u32 %v1598, %v1600
        %v1605 = vadd.s32 %v1601, 1
        %v1606 = vsel %vm1604, %v1605, %v1601
        %v1607 = vadd.s32 %v1602, %v1606
        %v1608 = vadd.s32 %v1607, 536870912
        %v1609 = vshrl.u32 %v1608, 30
        %v1610 = vshll.u32 %v1609, 30
        %v1611 = vsub.s32 %v1607, %v1610
        %vm1612 = vcmp.lt.s32.totalorder %v1611, 0
        %v1613 = vsub.s32 0, %v1611
        %v1614 = vsel %vm1612, %v1613, %v1611
        %v1615 = vclz %v1614
        %v1616 = vsub.s32 %v1615, 2
        %vm1617 = vcmp.gt.s32.totalorder 0, %v1616
        %v1618 = vsel %vm1617, 0, %v1616
        %v1619 = vsub.s32 32, %v1618
        %v1620 = vshll.u32 %v1611, %v1618
        %v1621 = vshrl.u32 %v1603, %v1619
        %v1622 = vor.u32 %v1620, %v1621
        %v1623 = vsub.s32 4294967266, %v1618
        %v1624 = vadd.s32 %v1623, 127
        %v1625 = vshll.u32 %v1624, 23
        %v1626 = vor.u32 4788187, %v1625
        %v1627 = vand.u32 2147483647, %v1626
        %v1629 = vcvt.s32.f32 %v1622
        %v1630 = vmul.f32 %v1629, %v1627
        %v1631 = vxor.u32 %v1630, 2147483648
        %v1632 = vsel %vm1549, %v1631, %v1630
        %v1633 = vsub.s32 4, %v1609
        %v1634 = vsel %vm1549, %v1633, %v1609
        %v1635 = vsel %vm1548, %v291, %v1632
        %v1636 = vsel %vm1548, 0, %v1634
        %v1637 = vcosq.f32.pop %v1635
        %v1638 = vsinq.f32.pop %v1635
        %vm1639 = vweird.f32 %v291
        %v1640 = vand.u32 %v1636, 3
        %vm1641 = vcmp.lt.s32.totalorder %v1640, 2
        %vm1642 = vcmp.eq.s32.totalorder %v1640, 0
        %v1643 = vxor.u32 %v1638, 2147483648
        %v1644 = vsel %vm1642, %v1637, %v1643
        %vm1645 = vcmp.eq.s32.totalorder %v1640, 2
        %v1646 = vxor.u32 %v1637, 2147483648
        %v1647 = vsel %vm1645, %v1646, %v1638
        %v1648 = vsel %vm1641, %v1644, %v1647
        %v1649 = vsel %vm1639, nan, %v1648
        %v1650 = vand.u32 2147483647, %v292
        %vm1651 = vcmp.le.f32.partialorder %v1650, 0.7853982
        %vm1652 = vcmp.lt.s32.totalorder %v292, 0
        %v1653 = vand.u32 %v292, 2139095040
        %v1654 = vshrl.u32 %v1653, 23
        %v1655 = vsub.s32 %v1654, 127
        %v1656 = vand.u32 2147483647, %v292
        %v1657 = vand.u32 %v1656, 8388607
        %v1658 = vor.u32 %v1657, 8388608
        %v1659 = vsub.s32 0, %v1658
        %v1660 = vadd.s32 %v1655, 1
        %vm1661 = vcmp.gt.s32.totalorder %v1660, 0
        %v1662 = vsel %vm1661, %v1660, 0
        %v1663 = vshrl.u32 %v1662, 5
        %v1664 = vand.u32 %v1662, 31
        %v1665 = vsub.s32 32, %v1664
        %v1666 = vshrl.u32 683565275, %v1665
        %v1667 = vshll.u32 683565275, %v1664
        %v1668 = vshrl.u32 2475754826, %v1665
        %v1669 = vor.u32 %v1667, %v1668
        %v1670 = vshll.u32 2475754826, %v1664
        %v1671 = vshrl.u32 2131351028, %v1665
        %v1672 = vor.u32 %v1670, %v1671
        %v1673 = vshll.u32 2131351028, %v1664
        %v1674 = vshrl.u32 2102212464, %v1665
        %v1675 = vor.u32 %v1673, %v1674
        %v1676 = vshll.u32 2102212464, %v1664
        %v1677 = vshrl.u32 920167782, %v1665
        %v1678 = vor.u32 %v1676, %v1677
        %v1679 = vshll.u32 920167782, %v1664
        %v1680 = vshrl.u32 1326507024, %v1665
        %v1681 = vor.u32 %v1679, %v1680
        %vm1682 = vcmp.lt.s32.totalorder %v1663, 1
        %vm1683 = vcmp.lt.s32.totalorder %v1663, 2
        %vm1684 = vcmp.lt.s32.totalorder %v1663, 3
        %vm1685 = vcmp.lt.s32.totalorder %v1663, 4
        %v1686 = vsel %vm1682, %v1666, %v1669
        %v1687 = vsel %vm1685, %v1675, 2102212464
        %v1688 = vsel %vm1684, %v1672, %v1687
        %v1689 = vsel %vm1683, %v1686, %v1688
        %v1690 = vsel %vm1682, %v1669, %v1672
        %v1691 = vsel %vm1685, %v1678, 920167782
        %v1692 = vsel %vm1684, %v1675, %v1691
        %v1693 = vsel %vm1683, %v1690, %v1692
        %v1694 = vsel %vm1682, %v1672, %v1675
        %v1695 = vsel %vm1685, %v1681, 1326507024
        %v1696 = vsel %vm1684, %v1678, %v1695
        %v1697 = vsel %vm1683, %v1694, %v1696
        %v1698 = vshll.u32 %v1658, 8
        %v1699 = vmul.u32.u64.compose %v1698, %v1697
        %v1700 = vextract.low.u32 %v1699
        %v1701 = vextract.high.u32 %v1699
        %v1702 = vmul.u32.u64.compose %v1698, %v1693
        %v1703 = vextract.low.u32 %v1702
        %v1704 = vextract.high.u32 %v1702
        %v1705 = vmul.u32 %v1698, %v1689
        %v1706 = vadd.s32 %v1701, %v1703
        %vm1707 = vc.u32 %v1701, %v1703
        %v1708 = vadd.s32 %v1704, 1
        %v1709 = vsel %vm1707, %v1708, %v1704
        %v1710 = vadd.s32 %v1705, %v1709
        %v1711 = vadd.s32 %v1710, 536870912
        %v1712 = vshrl.u32 %v1711, 30
        %v1713 = vshll.u32 %v1712, 30
        %v1714 = vsub.s32 %v1710, %v1713
        %vm1715 = vcmp.lt.s32.totalorder %v1714, 0
        %v1716 = vsub.s32 0, %v1714
        %v1717 = vsel %vm1715, %v1716, %v1714
        %v1718 = vclz %v1717
        %v1719 = vsub.s32 %v1718, 2
        %vm1720 = vcmp.gt.s32.totalorder 0, %v1719
        %v1721 = vsel %vm1720, 0, %v1719
        %v1722 = vsub.s32 32, %v1721
        %v1723 = vshll.u32 %v1714, %v1721
        %v1724 = vshrl.u32 %v1706, %v1722
        %v1725 = vor.u32 %v1723, %v1724
        %v1726 = vsub.s32 4294967266, %v1721
        %v1727 = vadd.s32 %v1726, 127
        %v1728 = vshll.u32 %v1727, 23
        %v1729 = vor.u32 4788187, %v1728
        %v1730 = vand.u32 2147483647, %v1729
        %v1732 = vcvt.s32.f32 %v1725
        %v1733 = vmul.f32 %v1732, %v1730
        %v1734 = vxor.u32 %v1733, 2147483648
        %v1735 = vsel %vm1652, %v1734, %v1733
        %v1736 = vsub.s32 4, %v1712
        %v1737 = vsel %vm1652, %v1736, %v1712
        %v1738 = vsel %vm1651, %v292, %v1735
        %v1739 = vsel %vm1651, 0, %v1737
        %v1740 = vcosq.f32.pop %v1738
        %v1741 = vsinq.f32.pop %v1738
        %vm1742 = vweird.f32 %v292
        %v1743 = vand.u32 %v1739, 3
        %vm1744 = vcmp.lt.s32.totalorder %v1743, 2
        %vm1745 = vcmp.eq.s32.totalorder %v1743, 0
        %v1746 = vxor.u32 %v1741, 2147483648
        %v1747 = vsel %vm1745, %v1740, %v1746
        %vm1748 = vcmp.eq.s32.totalorder %v1743, 2
        %v1749 = vxor.u32 %v1740, 2147483648
        %v1750 = vsel %vm1748, %v1749, %v1741
        %v1751 = vsel %vm1744, %v1747, %v1750
        %v1752 = vsel %vm1742, nan, %v1751
        %v1753 = vand.u32 2147483647, %v293
        %vm1754 = vcmp.le.f32.partialorder %v1753, 0.7853982
        %vm1755 = vcmp.lt.s32.totalorder %v293, 0
        %v1756 = vand.u32 %v293, 2139095040
        %v1757 = vshrl.u32 %v1756, 23
        %v1758 = vsub.s32 %v1757, 127
        %v1759 = vand.u32 2147483647, %v293
        %v1760 = vand.u32 %v1759, 8388607
        %v1761 = vor.u32 %v1760, 8388608
        %v1762 = vsub.s32 0, %v1761
        %v1763 = vadd.s32 %v1758, 1
        %vm1764 = vcmp.gt.s32.totalorder %v1763, 0
        %v1765 = vsel %vm1764, %v1763, 0
        %v1766 = vshrl.u32 %v1765, 5
        %v1767 = vand.u32 %v1765, 31
        %v1768 = vsub.s32 32, %v1767
        %v1769 = vshrl.u32 683565275, %v1768
        %v1770 = vshll.u32 683565275, %v1767
        %v1771 = vshrl.u32 2475754826, %v1768
        %v1772 = vor.u32 %v1770, %v1771
        %v1773 = vshll.u32 2475754826, %v1767
        %v1774 = vshrl.u32 2131351028, %v1768
        %v1775 = vor.u32 %v1773, %v1774
        %v1776 = vshll.u32 2131351028, %v1767
        %v1777 = vshrl.u32 2102212464, %v1768
        %v1778 = vor.u32 %v1776, %v1777
        %v1779 = vshll.u32 2102212464, %v1767
        %v1780 = vshrl.u32 920167782, %v1768
        %v1781 = vor.u32 %v1779, %v1780
        %v1782 = vshll.u32 920167782, %v1767
        %v1783 = vshrl.u32 1326507024, %v1768
        %v1784 = vor.u32 %v1782, %v1783
        %vm1785 = vcmp.lt.s32.totalorder %v1766, 1
        %vm1786 = vcmp.lt.s32.totalorder %v1766, 2
        %vm1787 = vcmp.lt.s32.totalorder %v1766, 3
        %vm1788 = vcmp.lt.s32.totalorder %v1766, 4
        %v1789 = vsel %vm1785, %v1769, %v1772
        %v1790 = vsel %vm1788, %v1778, 2102212464
        %v1791 = vsel %vm1787, %v1775, %v1790
        %v1792 = vsel %vm1786, %v1789, %v1791
        %v1793 = vsel %vm1785, %v1772, %v1775
        %v1794 = vsel %vm1788, %v1781, 920167782
        %v1795 = vsel %vm1787, %v1778, %v1794
        %v1796 = vsel %vm1786, %v1793, %v1795
        %v1797 = vsel %vm1785, %v1775, %v1778
        %v1798 = vsel %vm1788, %v1784, 1326507024
        %v1799 = vsel %vm1787, %v1781, %v1798
        %v1800 = vsel %vm1786, %v1797, %v1799
        %v1801 = vshll.u32 %v1761, 8
        %v1802 = vmul.u32.u64.compose %v1801, %v1800
        %v1803 = vextract.low.u32 %v1802
        %v1804 = vextract.high.u32 %v1802
        %v1805 = vmul.u32.u64.compose %v1801, %v1796
        %v1806 = vextract.low.u32 %v1805
        %v1807 = vextract.high.u32 %v1805
        %v1808 = vmul.u32 %v1801, %v1792
        %v1809 = vadd.s32 %v1804, %v1806
        %vm1810 = vc.u32 %v1804, %v1806
        %v1811 = vadd.s32 %v1807, 1
        %v1812 = vsel %vm1810, %v1811, %v1807
        %v1813 = vadd.s32 %v1808, %v1812
        %v1814 = vadd.s32 %v1813, 536870912
        %v1815 = vshrl.u32 %v1814, 30
        %v1816 = vshll.u32 %v1815, 30
        %v1817 = vsub.s32 %v1813, %v1816
        %vm1818 = vcmp.lt.s32.totalorder %v1817, 0
        %v1819 = vsub.s32 0, %v1817
        %v1820 = vsel %vm1818, %v1819, %v1817
        %v1821 = vclz %v1820
        %v1822 = vsub.s32 %v1821, 2
        %vm1823 = vcmp.gt.s32.totalorder 0, %v1822
        %v1824 = vsel %vm1823, 0, %v1822
        %v1825 = vsub.s32 32, %v1824
        %v1826 = vshll.u32 %v1817, %v1824
        %v1827 = vshrl.u32 %v1809, %v1825
        %v1828 = vor.u32 %v1826, %v1827
        %v1829 = vsub.s32 4294967266, %v1824
        %v1830 = vadd.s32 %v1829, 127
        %v1831 = vshll.u32 %v1830, 23
        %v1832 = vor.u32 4788187, %v1831
        %v1833 = vand.u32 2147483647, %v1832
        %v1835 = vcvt.s32.f32 %v1828
        %v1836 = vmul.f32 %v1835, %v1833
        %v1837 = vxor.u32 %v1836, 2147483648
        %v1838 = vsel %vm1755, %v1837, %v1836
        %v1839 = vsub.s32 4, %v1815
        %v1840 = vsel %vm1755, %v1839, %v1815
        %v1841 = vsel %vm1754, %v293, %v1838
        %v1842 = vsel %vm1754, 0, %v1840
        %v1843 = vcosq.f32.pop %v1841
        %v1844 = vsinq.f32.pop %v1841
        %vm1845 = vweird.f32 %v293
        %v1846 = vand.u32 %v1842, 3
        %vm1847 = vcmp.lt.s32.totalorder %v1846, 2
        %vm1848 = vcmp.eq.s32.totalorder %v1846, 0
        %v1849 = vxor.u32 %v1844, 2147483648
        %v1850 = vsel %vm1848, %v1843, %v1849
        %vm1851 = vcmp.eq.s32.totalorder %v1846, 2
        %v1852 = vxor.u32 %v1843, 2147483648
        %v1853 = vsel %vm1851, %v1852, %v1844
        %v1854 = vsel %vm1847, %v1850, %v1853
        %v1855 = vsel %vm1845, nan, %v1854
        %v1856 = vand.u32 2147483647, %v294
        %vm1857 = vcmp.le.f32.partialorder %v1856, 0.7853982
        %vm1858 = vcmp.lt.s32.totalorder %v294, 0
        %v1859 = vand.u32 %v294, 2139095040
        %v1860 = vshrl.u32 %v1859, 23
        %v1861 = vsub.s32 %v1860, 127
        %v1862 = vand.u32 2147483647, %v294
        %v1863 = vand.u32 %v1862, 8388607
        %v1864 = vor.u32 %v1863, 8388608
        %v1865 = vsub.s32 0, %v1864
        %v1866 = vadd.s32 %v1861, 1
        %vm1867 = vcmp.gt.s32.totalorder %v1866, 0
        %v1868 = vsel %vm1867, %v1866, 0
        %v1869 = vshrl.u32 %v1868, 5
        %v1870 = vand.u32 %v1868, 31
        %v1871 = vsub.s32 32, %v1870
        %v1872 = vshrl.u32 683565275, %v1871
        %v1873 = vshll.u32 683565275, %v1870
        %v1874 = vshrl.u32 2475754826, %v1871
        %v1875 = vor.u32 %v1873, %v1874
        %v1876 = vshll.u32 2475754826, %v1870
        %v1877 = vshrl.u32 2131351028, %v1871
        %v1878 = vor.u32 %v1876, %v1877
        %v1879 = vshll.u32 2131351028, %v1870
        %v1880 = vshrl.u32 2102212464, %v1871
        %v1881 = vor.u32 %v1879, %v1880
        %v1882 = vshll.u32 2102212464, %v1870
        %v1883 = vshrl.u32 920167782, %v1871
        %v1884 = vor.u32 %v1882, %v1883
        %v1885 = vshll.u32 920167782, %v1870
        %v1886 = vshrl.u32 1326507024, %v1871
        %v1887 = vor.u32 %v1885, %v1886
        %vm1888 = vcmp.lt.s32.totalorder %v1869, 1
        %vm1889 = vcmp.lt.s32.totalorder %v1869, 2
        %vm1890 = vcmp.lt.s32.totalorder %v1869, 3
        %vm1891 = vcmp.lt.s32.totalorder %v1869, 4
        %v1892 = vsel %vm1888, %v1872, %v1875
        %v1893 = vsel %vm1891, %v1881, 2102212464
        %v1894 = vsel %vm1890, %v1878, %v1893
        %v1895 = vsel %vm1889, %v1892, %v1894
        %v1896 = vsel %vm1888, %v1875, %v1878
        %v1897 = vsel %vm1891, %v1884, 920167782
        %v1898 = vsel %vm1890, %v1881, %v1897
        %v1899 = vsel %vm1889, %v1896, %v1898
        %v1900 = vsel %vm1888, %v1878, %v1881
        %v1901 = vsel %vm1891, %v1887, 1326507024
        %v1902 = vsel %vm1890, %v1884, %v1901
        %v1903 = vsel %vm1889, %v1900, %v1902
        %v1904 = vshll.u32 %v1864, 8
        %v1905 = vmul.u32.u64.compose %v1904, %v1903
        %v1906 = vextract.low.u32 %v1905
        %v1907 = vextract.high.u32 %v1905
        %v1908 = vmul.u32.u64.compose %v1904, %v1899
        %v1909 = vextract.low.u32 %v1908
        %v1910 = vextract.high.u32 %v1908
        %v1911 = vmul.u32 %v1904, %v1895
        %v1912 = vadd.s32 %v1907, %v1909
        %vm1913 = vc.u32 %v1907, %v1909
        %v1914 = vadd.s32 %v1910, 1
        %v1915 = vsel %vm1913, %v1914, %v1910
        %v1916 = vadd.s32 %v1911, %v1915
        %v1917 = vadd.s32 %v1916, 536870912
        %v1918 = vshrl.u32 %v1917, 30
        %v1919 = vshll.u32 %v1918, 30
        %v1920 = vsub.s32 %v1916, %v1919
        %vm1921 = vcmp.lt.s32.totalorder %v1920, 0
        %v1922 = vsub.s32 0, %v1920
        %v1923 = vsel %vm1921, %v1922, %v1920
        %v1924 = vclz %v1923
        %v1925 = vsub.s32 %v1924, 2
        %vm1926 = vcmp.gt.s32.totalorder 0, %v1925
        %v1927 = vsel %vm1926, 0, %v1925
        %v1928 = vsub.s32 32, %v1927
        %v1929 = vshll.u32 %v1920, %v1927
        %v1930 = vshrl.u32 %v1912, %v1928
        %v1931 = vor.u32 %v1929, %v1930
        %v1932 = vsub.s32 4294967266, %v1927
        %v1933 = vadd.s32 %v1932, 127
        %v1934 = vshll.u32 %v1933, 23
        %v1935 = vor.u32 4788187, %v1934
        %v1936 = vand.u32 2147483647, %v1935
        %v1938 = vcvt.s32.f32 %v1931
        %v1939 = vmul.f32 %v1938, %v1936
        %v1940 = vxor.u32 %v1939, 2147483648
        %v1941 = vsel %vm1858, %v1940, %v1939
        %v1942 = vsub.s32 4, %v1918
        %v1943 = vsel %vm1858, %v1942, %v1918
        %v1944 = vsel %vm1857, %v294, %v1941
        %v1945 = vsel %vm1857, 0, %v1943
        %v1946 = vcosq.f32.pop %v1944
        %v1947 = vsinq.f32.pop %v1944
        %vm1948 = vweird.f32 %v294
        %v1949 = vand.u32 %v1945, 3
        %vm1950 = vcmp.lt.s32.totalorder %v1949, 2
        %vm1951 = vcmp.eq.s32.totalorder %v1949, 0
        %v1952 = vxor.u32 %v1947, 2147483648
        %v1953 = vsel %vm1951, %v1946, %v1952
        %vm1954 = vcmp.eq.s32.totalorder %v1949, 2
        %v1955 = vxor.u32 %v1946, 2147483648
        %v1956 = vsel %vm1954, %v1955, %v1947
        %v1957 = vsel %vm1950, %v1953, %v1956
        %v1958 = vsel %vm1948, nan, %v1957
        %1959 = vst [vmem:[%s161 + $0x40] sm:$0xff] %v1237
        %1960 = vst [vmem:[%s161 + $0x48] sm:$0xff] %v1340
        %1961 = vst [vmem:[%s161 + $0x50] sm:$0xff] %v1443
        %1962 = vst [vmem:[%s161 + $0x58] sm:$0xff] %v1546
        %1963 = vst [vmem:[%s161 + $0x60] sm:$0xff] %v1649
        %1964 = vst [vmem:[%s161 + $0x68] sm:$0xff] %v1752
        %1965 = vst [vmem:[%s161 + $0x70] sm:$0xff] %v1855
        %1966 = vst [vmem:[%s161 + $0x78] sm:$0xff] %v1958
        %s1967 = sand.u32 %s87, 1
        %s1968 = scalar_lea.sflag [#allocation3], %s1967
        %s1969 = sand.u32 %s87, 1
        %s1970 = smul.addr %s1969, 128
        %s1971 = scalar_lea.vmem [#allocation2], %s1970
        // Predicated region
        $region29: #{tpu_custom_call.1} parent=27 // pred_check
          %p1972 = pneg %p97
        $region30: #{tpu_custom_call.1} parent=27 // pred_check_branch
          %1974 = sbr.rel (%p1972) target = $region32
        $region31: #{tpu_custom_call.1} parent=27 // pred_region
          %s1975 = smul.u32 2, %s21
          %s1977 = ssub.s32 2048, 2048
          %1978 = vsyncadd %s1968, %s1977
          %s1979 = smul.addr %s20, 16
          %s1980 = sadd.s32 %s1975, %s1979
          %s1981 = smul.addr %s1980, 128
          %s1982 = scalar_lea.hbm %s2, %s1981
          %s1983 = sshll.u32 %s1971, 4
          %s1984 = int_to_ptr.vmem [resolvable:$true] %s1983
          %1989 = dma.vmem_to_hbm [thread:$0]  %s1984, 2048, %s1982, %s1968, 256, 256, 16
        $region32: #{tpu_custom_call.1} parent=27 // pred_fallthru
          _
      $region28: #{tpu_custom_call.1} parent=5 // pred_fallthru
        _
      %p1990 = scmp.le.s32.totalorder 2, %s11
      // Predicated region
      $region33: #{tpu_custom_call.1} parent=5 // pred_check
        %p1991 = pneg %p1990
      $region34: #{tpu_custom_call.1} parent=5 // pred_check_branch
        %1993 = sbr.rel (%p1991) target = $region36
      $region35: #{tpu_custom_call.1} parent=5 // pred_region
        %s1994 = ssub.s32 %s11, 2
        // Predicated region
        $region37: #{tpu_custom_call.1} parent=35 // pred_check
          %p1995 = pneg %p103
        $region38: #{tpu_custom_call.1} parent=35 // pred_check_branch
          %1997 = sbr.rel (%p1995) target = $region40
        $region39: #{tpu_custom_call.1} parent=35 // pred_region
          %s1998 = sand.u32 %s88, 1
          %s1999 = scalar_lea.sflag [#allocation3], %s1998
          %s2000 = sand.u32 %s88, 1
          %s2001 = smul.addr %s2000, 128
          %s2002 = scalar_lea.vmem [#allocation2], %s2001
          %2003 = dma.done %s1999, 2048
        $region40: #{tpu_custom_call.1} parent=35 // pred_fallthru
          _
      $region36: #{tpu_custom_call.1} parent=5 // pred_fallthru
        _
    $region6: #{tpu_custom_call.1} parent=1 // loop_footer
      %s15 = sadd.s32 1, %s11
    $region7: #{tpu_custom_call.1} parent=1 // loop_footer_branch
      %10 = sbr.rel target = $region3
    $region8: #{tpu_custom_call.1} parent=1 // loop_exit
      _
    %2004 = vsyncpa [#allocation3], 1
    %s2005 = scalar_lea.sflag [#allocation3], 1
    %2006 = vsyncpa %s2005, 1

</llo_original>
